<compile_context>
chip_gen: v7x
topology: tpu7x:2x2x1
jax: 0.10.0
libtpu: 0.0.40
codegen_flags: <defaults>
</compile_context>

<pallas_src>
import math
import functools

import jax
import jax.numpy as jnp
from jax import lax
from jax.experimental import pallas as pl
from jax.experimental.pallas import tpu as pltpu


def cross_attention_kernel(xq_ref, xkv_ref, wkv_ref, bkv_ref, wq_ref, bq_ref,
                           wo_ref, bo_ref, mask_ref, out_ref,
                           q_scr, m_scr, l_scr, acc_scr,
                           *, h, d_k, scale, use_approx_recip):
    """One (batch, q-tile, kv-tile) step of fused projections + attention + out-proj.

    Refs:
      xq_ref  : (1, tq,  D)   query-tile rows of x (compute dtype)
      xkv_ref : (1, tkv, D)   kv-tile rows of x (compute dtype)
      wkv_ref : (D, 2D)  bkv_ref: (1, 2D) f32
      wq_ref  : (D, D)   bq_ref : (1, D)  f32
      wo_ref  : (D, D)   bo_ref : (1, D)  f32
      mask_ref: (tq, tkv) int32, nonzero => masked_fill with +1e9 (as in the reference)
      out_ref : (1, tq, D)
    Scratch:
      q_scr  : (tq, D)    compute dtype   (query projection for this q tile)
      m_scr  : (h, tq, 1) f32             (running row max, per head)
      l_scr  : (h, tq, 1) f32             (running softmax denom, per head)
      acc_scr: (tq, D)    f32             (running context, head slices in place)
    """
    ki = pl.program_id(2)
    nk = pl.num_programs(2)
    d_model = h * d_k

    @pl.when(ki == 0)
    def _init():
        xq = xq_ref[0]                                                   # (tq, D)
        q = jnp.dot(xq, wq_ref[...],
                    preferred_element_type=jnp.float32) + bq_ref[...]
        q_scr[...] = q.astype(q_scr.dtype)
        m_scr[...] = jnp.full_like(m_scr, -jnp.inf)
        l_scr[...] = jnp.zeros_like(l_scr)
        acc_scr[...] = jnp.zeros_like(acc_scr)

    # K/V projection for this kv tile: (tkv, 2D) accumulated in f32 on the MXU.
    xkv = xkv_ref[0]                                                     # (tkv, D)
    kv = jnp.dot(xkv, wkv_ref[...],
                 preferred_element_type=jnp.float32) + bkv_ref[...]
    k = kv[:, :d_model].astype(xkv.dtype)                                # compute dtype
    v = kv[:, d_model:].astype(xkv.dtype)

    mask = mask_ref[...] != 0                                            # (tq, tkv)

    # Contract d_k of both operands directly (NT matmul) — no explicit transpose.
    dims_qk = (((1,), (1,)), ((), ()))

    for hi in range(h):                                                  # h is small & static
        sl = slice(hi * d_k, (hi + 1) * d_k)
        qh = q_scr[:, sl]                                                # (tq,  d_k)
        kh = k[:, sl]                                                    # (tkv, d_k)
        vh = v[:, sl]                                                    # (tkv, d_k)

        s = lax.dot_general(qh, kh, dims_qk,
                            preferred_element_type=jnp.float32) * scale  # (tq, tkv)
        # masked_fill_(mask, 1e9) — yes, the reference fills with +1e9.
        s = jnp.where(mask, jnp.float32(1e9), s)

        m_old = m_scr[hi]                                                # (tq, 1)
        m_new = jnp.maximum(m_old, jnp.max(s, axis=-1, keepdims=True))
        alpha = jnp.exp(m_old - m_new)
        p = jnp.exp(s - m_new)                                           # (tq, tkv) f32

        l_scr[hi] = alpha * l_scr[hi] + jnp.sum(p, axis=-1, keepdims=True)
        acc_scr[:, sl] = alpha * acc_scr[:, sl] + jnp.dot(
            p.astype(vh.dtype), vh, preferred_element_type=jnp.float32)
        m_scr[hi] = m_new

    @pl.when(ki == nk - 1)
    def _finalize():
        # Normalize each head's context slice in place (dropout p=0.0 -> identity).
        for hi in range(h):
            sl = slice(hi * d_k, (hi + 1) * d_k)
            inv_l = pl.reciprocal(l_scr[hi], approx=use_approx_recip)    # (tq, 1)
            acc_scr[:, sl] = acc_scr[:, sl] * inv_l
        ctx = acc_scr[...].astype(wo_ref.dtype)                          # (tq, D)
        out = jnp.dot(ctx, wo_ref[...],
                      preferred_element_type=jnp.float32) + bo_ref[...]
        out_ref[0] = out.astype(out_ref.dtype)


def _pick_tile(n, target, align):
    """Largest divisor of n that is <= target and a multiple of `align`; else n."""
    if n <= target:
        return n
    for t in range(target, align - 1, -1):
        if n % t == 0 and t % align == 0:
            return t
    return n


def cross_attention(query, x, causal_mask, params, *, h,
                    compute_dtype=jnp.bfloat16, tq_max=256, tkv_max=256):
    """Pallas wrapper. `query` is accepted for signature parity but unused
    (faithful to the reference PyTorch forward, which recomputes q from x)."""
    del query
    B, S, D = x.shape
    assert D % h == 0, "d_model must be divisible by h (matches the PyTorch assert)"
    d_k = D // h
    out_dtype = x.dtype
    wkv, bkv, wq, bq, wo, bo = params

    tq = _pick_tile(S, tq_max, 8)       # second-to-last dims need /8 (or full extent)
    tkv = _pick_tile(S, tkv_max, 128)   # mask's last dim needs /128 (or full extent)
    nq, nk = S // tq, S // tkv

    if causal_mask is None:
        mask = jnp.zeros((S, S), jnp.int32)
    else:
        mask = causal_mask.astype(jnp.int32)

    # Cast MXU operands to the compute dtype (bf16 by default); biases stay f32 and are
    # added to the f32 accumulators inside the kernel.
    x_c = x.astype(compute_dtype)
    wkv_c, wq_c, wo_c = (w.astype(compute_dtype) for w in (wkv, wq, wo))
    bkv_r = bkv.reshape(1, -1).astype(jnp.float32)
    bq_r = bq.reshape(1, -1).astype(jnp.float32)
    bo_r = bo.reshape(1, -1).astype(jnp.float32)

    use_approx = (compute_dtype == jnp.bfloat16)
    kernel = functools.partial(
        cross_attention_kernel, h=h, d_k=d_k,
        scale=1.0 / math.sqrt(d_k), use_approx_recip=use_approx)

    itemsize = jnp.zeros((), compute_dtype).dtype.itemsize
    flops = (2 * B * S * (2 * D) * D * nq     # kv projection (recomputed per q tile)
             + 2 * B * S * D * D              # q projection
             + 4 * B * S * S * D              # QK^T + PV
             + 2 * B * S * D * D)             # output projection
    bytes_accessed = (x_c.size * itemsize * (1 + nq)
                      + (wkv_c.size + wq_c.size + wo_c.size) * itemsize
                      + (bkv_r.size + bq_r.size + bo_r.size) * 4
                      + mask.size * 4
                      + B * S * D * jnp.zeros((), out_dtype).dtype.itemsize)
    cost = pl.CostEstimate(flops=int(flops),
                           transcendentals=int(B * h * S * S),
                           bytes_accessed=int(bytes_accessed))

    return pl.pallas_call(
        kernel,
        out_shape=jax.ShapeDtypeStruct((B, S, D), out_dtype),
        grid_spec=pltpu.PrefetchScalarGridSpec(
            num_scalar_prefetch=0,
            grid=(B, nq, nk),
            in_specs=[
                pl.BlockSpec((1, tq, D), lambda b, qi, ki: (b, qi, 0)),    # x (q-tile rows)
                pl.BlockSpec((1, tkv, D), lambda b, qi, ki: (b, ki, 0)),   # x (kv-tile rows)
                pl.BlockSpec((D, 2 * D), lambda b, qi, ki: (0, 0)),        # W_kv
                pl.BlockSpec((1, 2 * D), lambda b, qi, ki: (0, 0)),        # b_kv
                pl.BlockSpec((D, D), lambda b, qi, ki: (0, 0)),            # W_q
                pl.BlockSpec((1, D), lambda b, qi, ki: (0, 0)),            # b_q
                pl.BlockSpec((D, D), lambda b, qi, ki: (0, 0)),            # W_o
                pl.BlockSpec((1, D), lambda b, qi, ki: (0, 0)),            # b_o
                pl.BlockSpec((tq, tkv), lambda b, qi, ki: (qi, ki)),       # mask tile
            ],
            out_specs=pl.BlockSpec((1, tq, D), lambda b, qi, ki: (b, qi, 0)),
            scratch_shapes=[
                pltpu.VMEM((tq, D), compute_dtype),    # q tile
                pltpu.VMEM((h, tq, 1), jnp.float32),   # running max m
                pltpu.VMEM((h, tq, 1), jnp.float32),   # running denom l
                pltpu.VMEM((tq, D), jnp.float32),      # running context
            ],
        ),
        compiler_params=pltpu.CompilerParams(
            dimension_semantics=("parallel", "parallel", "arbitrary")),
        cost_estimate=cost,
    )(x_c, x_c, wkv_c, bkv_r, wq_c, bq_r, wo_c, bo_r, mask)


def cross_attention_reference(x, causal_mask, params, *, h,
                              compute_dtype=jnp.float32):
    """Pure-JAX reference mirroring the PyTorch forward. `compute_dtype` applies the
    same operand rounding as the kernel's MXU path so both paths can be validated."""
    B, S, D = x.shape
    d_k = D // h
    wkv, bkv, wq, bq, wo, bo = params
    cd = compute_dtype

    xc = x.astype(cd)
    kv = jnp.dot(xc, wkv.astype(cd), preferred_element_type=jnp.float32) + bkv
    k, v = kv[..., :D], kv[..., D:]
    q = jnp.dot(xc, wq.astype(cd), preferred_element_type=jnp.float32) + bq

    def split_heads(t):  # (B,S,D) -> (B,h,S,d_k)
        return t.reshape(B, S, h, d_k).transpose(0, 2, 1, 3)

    qh, kh, vh = (split_heads(t.astype(cd)) for t in (q, k, v))
    scores = jnp.einsum("bhqd,bhkd->bhqk", qh, kh,
                        preferred_element_type=jnp.float32) / math.sqrt(d_k)
    if causal_mask is not None:
        scores = jnp.where(causal_mask[None, None], jnp.float32(1e9), scores)
    p = jax.nn.softmax(scores, axis=-1)
    ctx = jnp.einsum("bhqk,bhkd->bhqd", p.astype(cd), vh,
                     preferred_element_type=jnp.float32)
    ctx = ctx.transpose(0, 2, 1, 3).reshape(B, S, D)
    return jnp.dot(ctx.astype(cd), wo.astype(cd),
                   preferred_element_type=jnp.float32) + bo


if __name__ == "__main__":
    B, S, d_model, h = 2, 8, 32, 4

    key = jax.random.PRNGKey(0)
    ks = jax.random.split(key, 8)

    # Deterministic synthetic parameters (nn.Linear shapes, stored transposed).
    w_scale = 1.0 / math.sqrt(d_model)
    wkv = jax.random.normal(ks[0], (d_model, 2 * d_model), jnp.float32) * w_scale
    bkv = jax.random.normal(ks[1], (2 * d_model,), jnp.float32) * w_scale
    wq = jax.random.normal(ks[2], (d_model, d_model), jnp.float32) * w_scale
    bq = jax.random.normal(ks[3], (d_model,), jnp.float32) * w_scale
    wo = jax.random.normal(ks[4], (d_model, d_model), jnp.float32) * w_scale
    bo = jax.random.normal(ks[5], (d_model,), jnp.float32) * w_scale
    params = (wkv, bkv, wq, bq, wo, bo)

    # Inputs. `query` is part of the module signature but unused by the reference forward.
    query_in = jax.random.normal(ks[6], (B, S, d_model), jnp.float32)
    x = jax.random.normal(ks[7], (B, S, d_model), jnp.float32)
    # "causal" mask: True above the diagonal (positions that get masked_fill'ed with 1e9).
    causal_mask = jnp.triu(jnp.ones((S, S), jnp.bool_), k=1)

    # 1) strict check: f32 compute path vs pure-f32 reference.
    out_f32 = cross_attention(query_in, x, causal_mask, params, h=h,
                              compute_dtype=jnp.float32)
    out_f32 = jax.block_until_ready(out_f32)
    ref_f32 = cross_attention_reference(x, causal_mask, params, h=h,
                                        compute_dtype=jnp.float32)
    assert out_f32.shape == (B, S, d_model)
    err32 = jnp.max(jnp.abs(out_f32 - ref_f32))
    assert jnp.allclose(out_f32, ref_f32, atol=1e-4, rtol=1e-4), \
        f"f32 path max abs err {err32}"

    # 2) optimized bf16-MXU path vs reference with matching bf16 operand rounding.
    out_bf16 = cross_attention(query_in, x, causal_mask, params, h=h,
                               compute_dtype=jnp.bfloat16)
    out_bf16 = jax.block_until_ready(out_bf16)
    ref_bf16 = cross_attention_reference(x, causal_mask, params, h=h,
                                         compute_dtype=jnp.bfloat16)
    errbf = jnp.max(jnp.abs(out_bf16 - ref_bf16))
    assert jnp.allclose(out_bf16, ref_bf16, atol=3e-2, rtol=3e-2), \
        f"bf16 path max abs err {errbf}"

    print("KERNEL_OK")
</pallas_src>

<mosaic_0001>
module attributes {stable_mosaic.version = 11 : i64} {
  func.func @cross_attention_kernel(%arg0: i32, %arg1: i32, %arg2: i32, %arg3: memref<1x8x32xf32, #tpu.memory_space<vmem>>, %arg4: memref<1x8x32xf32, #tpu.memory_space<vmem>>, %arg5: memref<32x64xf32, #tpu.memory_space<vmem>>, %arg6: memref<1x64xf32, #tpu.memory_space<vmem>>, %arg7: memref<32x32xf32, #tpu.memory_space<vmem>>, %arg8: memref<1x32xf32, #tpu.memory_space<vmem>>, %arg9: memref<32x32xf32, #tpu.memory_space<vmem>>, %arg10: memref<1x32xf32, #tpu.memory_space<vmem>>, %arg11: memref<8x8xi32, #tpu.memory_space<vmem>>, %arg12: memref<1x8x32xf32, #tpu.memory_space<vmem>>, %arg13: memref<8x32xf32, #tpu.memory_space<vmem>>, %arg14: memref<4x8x1xf32, #tpu.memory_space<vmem>>, %arg15: memref<4x8x1xf32, #tpu.memory_space<vmem>>, %arg16: memref<8x32xf32, #tpu.memory_space<vmem>>) attributes {dimension_semantics = [#tpu.dimension_semantics<parallel>, #tpu.dimension_semantics<parallel>, #tpu.dimension_semantics<arbitrary>], iteration_bounds = array<i64: 2, 1, 1>, scalar_prefetch = 0 : i64, scratch_operands = 4 : i64, tpu.core_type = #tpu.core_type<tc>, window_params = [{transform_indices = @transform_0, window_bounds = array<i64: 1, 8, 32>}, {transform_indices = @transform_1, window_bounds = array<i64: 1, 8, 32>}, {pipeline_mode = #tpu.pipeline_mode<synchronous>, transform_indices = @transform_2, window_bounds = array<i64: 32, 64>}, {pipeline_mode = #tpu.pipeline_mode<synchronous>, transform_indices = @transform_3, window_bounds = array<i64: 1, 64>}, {pipeline_mode = #tpu.pipeline_mode<synchronous>, transform_indices = @transform_4, window_bounds = array<i64: 32, 32>}, {pipeline_mode = #tpu.pipeline_mode<synchronous>, transform_indices = @transform_5, window_bounds = array<i64: 1, 32>}, {pipeline_mode = #tpu.pipeline_mode<synchronous>, transform_indices = @transform_6, window_bounds = array<i64: 32, 32>}, {pipeline_mode = #tpu.pipeline_mode<synchronous>, transform_indices = @transform_7, window_bounds = array<i64: 1, 32>}, {transform_indices = @transform_8, window_bounds = array<i64: 8, 8>}, {transform_indices = @transform_9, window_bounds = array<i64: 1, 8, 32>}]} {
    %c0_i32 = arith.constant 0 : i32
    %0 = arith.cmpi eq, %arg2, %c0_i32 : i32
    %1 = arith.extui %0 : i1 to i32
    %c0_i32_0 = arith.constant 0 : i32
    %2 = arith.cmpi ne, %1, %c0_i32_0 : i32
    scf.if %2 {
      %c0_102 = arith.constant 0 : index
      %c0_103 = arith.constant 0 : index
      %c0_104 = arith.constant 0 : index
      %162 = vector.load %arg3[%c0_102, %c0_103, %c0_104] : memref<1x8x32xf32, #tpu.memory_space<vmem>>, vector<1x8x32xf32>
      %163 = vector.shape_cast %162 : vector<1x8x32xf32> to vector<8x32xf32>
      %c0_105 = arith.constant 0 : index
      %c0_106 = arith.constant 0 : index
      %164 = vector.load %arg7[%c0_105, %c0_106] : memref<32x32xf32, #tpu.memory_space<vmem>>, vector<32x32xf32>
      %cst_107 = arith.constant dense<0.000000e+00> : vector<8x32xf32>
      %165 = tpu.matmul %163, %164, %cst_107 {dimension_numbers = #tpu.dot_dimension_numbers<[1], [0], [0], [1], [0, 0, 1, 1], [], []>} : vector<8x32xf32>, vector<32x32xf32>, vector<8x32xf32> -> vector<8x32xf32>
      %c0_108 = arith.constant 0 : index
      %c0_109 = arith.constant 0 : index
      %166 = vector.load %arg8[%c0_108, %c0_109] : memref<1x32xf32, #tpu.memory_space<vmem>>, vector<1x32xf32>
      %167 = vector.broadcast %166 : vector<1x32xf32> to vector<8x32xf32>
      %168 = arith.addf %165, %167 : vector<8x32xf32>
      %c0_110 = arith.constant 0 : index
      %c0_111 = arith.constant 0 : index
      %169 = vector.load %arg13[%c0_110, %c0_111] : memref<8x32xf32, #tpu.memory_space<vmem>>, vector<8x32xf32>
      tpu.vector_store %arg13[%c0_110, %c0_111], %168 {strides = array<i32>} : memref<8x32xf32, #tpu.memory_space<vmem>>, vector<8x32xf32>,
      %cst_112 = arith.constant 0xFF800000 : f32
      %170 = vector.broadcast %cst_112 : f32 to vector<4x8x1xf32>
      %c0_113 = arith.constant 0 : index
      %c0_114 = arith.constant 0 : index
      %c0_115 = arith.constant 0 : index
      %171 = vector.load %arg14[%c0_113, %c0_114, %c0_115] : memref<4x8x1xf32, #tpu.memory_space<vmem>>, vector<4x8x1xf32>
      tpu.vector_store %arg14[%c0_113, %c0_114, %c0_115], %170 {strides = array<i32>} : memref<4x8x1xf32, #tpu.memory_space<vmem>>, vector<4x8x1xf32>,
      %cst_116 = arith.constant 0.000000e+00 : f32
      %172 = vector.broadcast %cst_116 : f32 to vector<4x8x1xf32>
      %c0_117 = arith.constant 0 : index
      %c0_118 = arith.constant 0 : index
      %c0_119 = arith.constant 0 : index
      %173 = vector.load %arg15[%c0_117, %c0_118, %c0_119] : memref<4x8x1xf32, #tpu.memory_space<vmem>>, vector<4x8x1xf32>
      tpu.vector_store %arg15[%c0_117, %c0_118, %c0_119], %172 {strides = array<i32>} : memref<4x8x1xf32, #tpu.memory_space<vmem>>, vector<4x8x1xf32>,
      %cst_120 = arith.constant 0.000000e+00 : f32
      %174 = vector.broadcast %cst_120 : f32 to vector<8x32xf32>
      %c0_121 = arith.constant 0 : index
      %c0_122 = arith.constant 0 : index
      %175 = vector.load %arg16[%c0_121, %c0_122] : memref<8x32xf32, #tpu.memory_space<vmem>>, vector<8x32xf32>
      tpu.vector_store %arg16[%c0_121, %c0_122], %174 {strides = array<i32>} : memref<8x32xf32, #tpu.memory_space<vmem>>, vector<8x32xf32>,
    } else {
    }
    %c0 = arith.constant 0 : index
    %c0_1 = arith.constant 0 : index
    %c0_2 = arith.constant 0 : index
    %3 = vector.load %arg4[%c0, %c0_1, %c0_2] : memref<1x8x32xf32, #tpu.memory_space<vmem>>, vector<1x8x32xf32>
    %4 = vector.shape_cast %3 : vector<1x8x32xf32> to vector<8x32xf32>
    %c0_3 = arith.constant 0 : index
    %c0_4 = arith.constant 0 : index
    %5 = vector.load %arg5[%c0_3, %c0_4] : memref<32x64xf32, #tpu.memory_space<vmem>>, vector<32x64xf32>
    %cst = arith.constant dense<0.000000e+00> : vector<8x64xf32>
    %6 = tpu.matmul %4, %5, %cst {dimension_numbers = #tpu.dot_dimension_numbers<[1], [0], [0], [1], [0, 0, 1, 1], [], []>} : vector<8x32xf32>, vector<32x64xf32>, vector<8x64xf32> -> vector<8x64xf32>
    %c0_5 = arith.constant 0 : index
    %c0_6 = arith.constant 0 : index
    %7 = vector.load %arg6[%c0_5, %c0_6] : memref<1x64xf32, #tpu.memory_space<vmem>>, vector<1x64xf32>
    %8 = vector.broadcast %7 : vector<1x64xf32> to vector<8x64xf32>
    %9 = arith.addf %6, %8 : vector<8x64xf32>
    %10 = vector.extract_strided_slice %9 {offsets = [0, 0], sizes = [8, 32], strides = [1, 1]} : vector<8x64xf32> to vector<8x32xf32>
    %11 = vector.extract_strided_slice %9 {offsets = [0, 32], sizes = [8, 32], strides = [1, 1]} : vector<8x64xf32> to vector<8x32xf32>
    %c0_7 = arith.constant 0 : index
    %c0_8 = arith.constant 0 : index
    %12 = vector.load %arg11[%c0_7, %c0_8] : memref<8x8xi32, #tpu.memory_space<vmem>>, vector<8x8xi32>
    %c0_i32_9 = arith.constant 0 : i32
    %13 = vector.broadcast %c0_i32_9 : i32 to vector<8x8xi32>
    %14 = arith.cmpi ne, %12, %13 : vector<8x8xi32>
    %c0_10 = arith.constant 0 : index
    %c0_11 = arith.constant 0 : index
    %15 = vector.load %arg13[%c0_10, %c0_11] : memref<8x32xf32, #tpu.memory_space<vmem>>, vector<8x8xf32>
    %16 = vector.extract_strided_slice %10 {offsets = [0, 0], sizes = [8, 8], strides = [1, 1]} : vector<8x32xf32> to vector<8x8xf32>
    %17 = vector.extract_strided_slice %11 {offsets = [0, 0], sizes = [8, 8], strides = [1, 1]} : vector<8x32xf32> to vector<8x8xf32>
    %cst_12 = arith.constant dense<0.000000e+00> : vector<8x8xf32>
    %18 = tpu.matmul %15, %16, %cst_12 {dimension_numbers = #tpu.dot_dimension_numbers<[1], [1], [0], [0], [0, 0, 1, 0], [], []>} : vector<8x8xf32>, vector<8x8xf32>, vector<8x8xf32> -> vector<8x8xf32>
    %cst_13 = arith.constant 0.353553385 : f32
    %19 = vector.broadcast %cst_13 : f32 to vector<8x8xf32>
    %20 = arith.mulf %18, %19 : vector<8x8xf32>
    %cst_14 = arith.constant 1.000000e+09 : f32
    %21 = vector.broadcast %cst_14 : f32 to vector<8x8xf32>
    %22 = arith.select %14, %21, %20 : vector<8x8xi1>, vector<8x8xf32>
    %c0_15 = arith.constant 0 : index
    %c0_16 = arith.constant 0 : index
    %c0_17 = arith.constant 0 : index
    %23 = vector.load %arg14[%c0_15, %c0_16, %c0_17] : memref<4x8x1xf32, #tpu.memory_space<vmem>>, vector<1x8x1xf32>
    %24 = vector.shape_cast %23 : vector<1x8x1xf32> to vector<8x1xf32>
    %cst_18 = arith.constant dense<0xFF800000> : vector<8xf32>
    %25 = vector.multi_reduction <maximumf>, %22, %cst_18 [1] : vector<8x8xf32> to vector<8xf32>
    %26 = vector.shape_cast %25 : vector<8xf32> to vector<8x1xf32>
    %27 = arith.maximumf %24, %26 : vector<8x1xf32>
    %28 = arith.subf %24, %27 : vector<8x1xf32>
    %29 = math.exp %28 : vector<8x1xf32>
    %30 = vector.broadcast %27 : vector<8x1xf32> to vector<8x8xf32>
    %31 = arith.subf %22, %30 : vector<8x8xf32>
    %32 = math.exp %31 : vector<8x8xf32>
    %c0_19 = arith.constant 0 : index
    %c0_20 = arith.constant 0 : index
    %c0_21 = arith.constant 0 : index
    %33 = vector.load %arg15[%c0_19, %c0_20, %c0_21] : memref<4x8x1xf32, #tpu.memory_space<vmem>>, vector<1x8x1xf32>
    %34 = vector.shape_cast %33 : vector<1x8x1xf32> to vector<8x1xf32>
    %35 = arith.mulf %29, %34 : vector<8x1xf32>
    %cst_22 = arith.constant dense<0.000000e+00> : vector<8xf32>
    %36 = vector.multi_reduction <add>, %32, %cst_22 [1] : vector<8x8xf32> to vector<8xf32>
    %37 = vector.shape_cast %36 : vector<8xf32> to vector<8x1xf32>
    %38 = arith.addf %35, %37 : vector<8x1xf32>
    %c0_23 = arith.constant 0 : index
    %c0_24 = arith.constant 0 : index
    %c0_25 = arith.constant 0 : index
    %39 = vector.load %arg15[%c0_23, %c0_24, %c0_25] : memref<4x8x1xf32, #tpu.memory_space<vmem>>, vector<1x8x1xf32>
    %40 = vector.shape_cast %39 : vector<1x8x1xf32> to vector<8x1xf32>
    %41 = vector.shape_cast %38 : vector<8x1xf32> to vector<1x8x1xf32>
    tpu.vector_store %arg15[%c0_23, %c0_24, %c0_25], %41 {strides = array<i32>} : memref<4x8x1xf32, #tpu.memory_space<vmem>>, vector<1x8x1xf32>,
    %c0_26 = arith.constant 0 : index
    %c0_27 = arith.constant 0 : index
    %42 = vector.load %arg16[%c0_26, %c0_27] : memref<8x32xf32, #tpu.memory_space<vmem>>, vector<8x8xf32>
    %43 = vector.broadcast %29 : vector<8x1xf32> to vector<8x8xf32>
    %44 = arith.mulf %43, %42 : vector<8x8xf32>
    %cst_28 = arith.constant dense<0.000000e+00> : vector<8x8xf32>
    %45 = tpu.matmul %32, %17, %cst_28 {dimension_numbers = #tpu.dot_dimension_numbers<[1], [0], [0], [1], [0, 0, 1, 1], [], []>} : vector<8x8xf32>, vector<8x8xf32>, vector<8x8xf32> -> vector<8x8xf32>
    %46 = arith.addf %44, %45 : vector<8x8xf32>
    %c0_29 = arith.constant 0 : index
    %c0_30 = arith.constant 0 : index
    %47 = vector.load %arg16[%c0_29, %c0_30] : memref<8x32xf32, #tpu.memory_space<vmem>>, vector<8x8xf32>
    tpu.vector_store %arg16[%c0_29, %c0_30], %46 {strides = array<i32>} : memref<8x32xf32, #tpu.memory_space<vmem>>, vector<8x8xf32>,
    %c0_31 = arith.constant 0 : index
    %c0_32 = arith.constant 0 : index
    %c0_33 = arith.constant 0 : index
    %48 = vector.load %arg14[%c0_31, %c0_32, %c0_33] : memref<4x8x1xf32, #tpu.memory_space<vmem>>, vector<1x8x1xf32>
    %49 = vector.shape_cast %48 : vector<1x8x1xf32> to vector<8x1xf32>
    %50 = vector.shape_cast %27 : vector<8x1xf32> to vector<1x8x1xf32>
    tpu.vector_store %arg14[%c0_31, %c0_32, %c0_33], %50 {strides = array<i32>} : memref<4x8x1xf32, #tpu.memory_space<vmem>>, vector<1x8x1xf32>,
    %c0_34 = arith.constant 0 : index
    %c8 = arith.constant 8 : index
    %51 = vector.load %arg13[%c0_34, %c8] : memref<8x32xf32, #tpu.memory_space<vmem>>, vector<8x8xf32>
    %52 = vector.extract_strided_slice %10 {offsets = [0, 8], sizes = [8, 8], strides = [1, 1]} : vector<8x32xf32> to vector<8x8xf32>
    %53 = vector.extract_strided_slice %11 {offsets = [0, 8], sizes = [8, 8], strides = [1, 1]} : vector<8x32xf32> to vector<8x8xf32>
    %cst_35 = arith.constant dense<0.000000e+00> : vector<8x8xf32>
    %54 = tpu.matmul %51, %52, %cst_35 {dimension_numbers = #tpu.dot_dimension_numbers<[1], [1], [0], [0], [0, 0, 1, 0], [], []>} : vector<8x8xf32>, vector<8x8xf32>, vector<8x8xf32> -> vector<8x8xf32>
    %cst_36 = arith.constant 0.353553385 : f32
    %55 = vector.broadcast %cst_36 : f32 to vector<8x8xf32>
    %56 = arith.mulf %54, %55 : vector<8x8xf32>
    %cst_37 = arith.constant 1.000000e+09 : f32
    %57 = vector.broadcast %cst_37 : f32 to vector<8x8xf32>
    %58 = arith.select %14, %57, %56 : vector<8x8xi1>, vector<8x8xf32>
    %c1 = arith.constant 1 : index
    %c0_38 = arith.constant 0 : index
    %c0_39 = arith.constant 0 : index
    %59 = vector.load %arg14[%c1, %c0_38, %c0_39] : memref<4x8x1xf32, #tpu.memory_space<vmem>>, vector<1x8x1xf32>
    %60 = vector.shape_cast %59 : vector<1x8x1xf32> to vector<8x1xf32>
    %cst_40 = arith.constant dense<0xFF800000> : vector<8xf32>
    %61 = vector.multi_reduction <maximumf>, %58, %cst_40 [1] : vector<8x8xf32> to vector<8xf32>
    %62 = vector.shape_cast %61 : vector<8xf32> to vector<8x1xf32>
    %63 = arith.maximumf %60, %62 : vector<8x1xf32>
    %64 = arith.subf %60, %63 : vector<8x1xf32>
    %65 = math.exp %64 : vector<8x1xf32>
    %66 = vector.broadcast %63 : vector<8x1xf32> to vector<8x8xf32>
    %67 = arith.subf %58, %66 : vector<8x8xf32>
    %68 = math.exp %67 : vector<8x8xf32>
    %c1_41 = arith.constant 1 : index
    %c0_42 = arith.constant 0 : index
    %c0_43 = arith.constant 0 : index
    %69 = vector.load %arg15[%c1_41, %c0_42, %c0_43] : memref<4x8x1xf32, #tpu.memory_space<vmem>>, vector<1x8x1xf32>
    %70 = vector.shape_cast %69 : vector<1x8x1xf32> to vector<8x1xf32>
    %71 = arith.mulf %65, %70 : vector<8x1xf32>
    %cst_44 = arith.constant dense<0.000000e+00> : vector<8xf32>
    %72 = vector.multi_reduction <add>, %68, %cst_44 [1] : vector<8x8xf32> to vector<8xf32>
    %73 = vector.shape_cast %72 : vector<8xf32> to vector<8x1xf32>
    %74 = arith.addf %71, %73 : vector<8x1xf32>
    %c1_45 = arith.constant 1 : index
    %c0_46 = arith.constant 0 : index
    %c0_47 = arith.constant 0 : index
    %75 = vector.load %arg15[%c1_45, %c0_46, %c0_47] : memref<4x8x1xf32, #tpu.memory_space<vmem>>, vector<1x8x1xf32>
    %76 = vector.shape_cast %75 : vector<1x8x1xf32> to vector<8x1xf32>
    %77 = vector.shape_cast %74 : vector<8x1xf32> to vector<1x8x1xf32>
    tpu.vector_store %arg15[%c1_45, %c0_46, %c0_47], %77 {strides = array<i32>} : memref<4x8x1xf32, #tpu.memory_space<vmem>>, vector<1x8x1xf32>,
    %c0_48 = arith.constant 0 : index
    %c8_49 = arith.constant 8 : index
    %78 = vector.load %arg16[%c0_48, %c8_49] : memref<8x32xf32, #tpu.memory_space<vmem>>, vector<8x8xf32>
    %79 = vector.broadcast %65 : vector<8x1xf32> to vector<8x8xf32>
    %80 = arith.mulf %79, %78 : vector<8x8xf32>
    %cst_50 = arith.constant dense<0.000000e+00> : vector<8x8xf32>
    %81 = tpu.matmul %68, %53, %cst_50 {dimension_numbers = #tpu.dot_dimension_numbers<[1], [0], [0], [1], [0, 0, 1, 1], [], []>} : vector<8x8xf32>, vector<8x8xf32>, vector<8x8xf32> -> vector<8x8xf32>
    %82 = arith.addf %80, %81 : vector<8x8xf32>
    %c0_51 = arith.constant 0 : index
    %c8_52 = arith.constant 8 : index
    %83 = vector.load %arg16[%c0_51, %c8_52] : memref<8x32xf32, #tpu.memory_space<vmem>>, vector<8x8xf32>
    tpu.vector_store %arg16[%c0_51, %c8_52], %82 {strides = array<i32>} : memref<8x32xf32, #tpu.memory_space<vmem>>, vector<8x8xf32>,
    %c1_53 = arith.constant 1 : index
    %c0_54 = arith.constant 0 : index
    %c0_55 = arith.constant 0 : index
    %84 = vector.load %arg14[%c1_53, %c0_54, %c0_55] : memref<4x8x1xf32, #tpu.memory_space<vmem>>, vector<1x8x1xf32>
    %85 = vector.shape_cast %84 : vector<1x8x1xf32> to vector<8x1xf32>
    %86 = vector.shape_cast %63 : vector<8x1xf32> to vector<1x8x1xf32>
    tpu.vector_store %arg14[%c1_53, %c0_54, %c0_55], %86 {strides = array<i32>} : memref<4x8x1xf32, #tpu.memory_space<vmem>>, vector<1x8x1xf32>,
    %c0_56 = arith.constant 0 : index
    %c16 = arith.constant 16 : index
    %87 = vector.load %arg13[%c0_56, %c16] : memref<8x32xf32, #tpu.memory_space<vmem>>, vector<8x8xf32>
    %88 = vector.extract_strided_slice %10 {offsets = [0, 16], sizes = [8, 8], strides = [1, 1]} : vector<8x32xf32> to vector<8x8xf32>
    %89 = vector.extract_strided_slice %11 {offsets = [0, 16], sizes = [8, 8], strides = [1, 1]} : vector<8x32xf32> to vector<8x8xf32>
    %cst_57 = arith.constant dense<0.000000e+00> : vector<8x8xf32>
    %90 = tpu.matmul %87, %88, %cst_57 {dimension_numbers = #tpu.dot_dimension_numbers<[1], [1], [0], [0], [0, 0, 1, 0], [], []>} : vector<8x8xf32>, vector<8x8xf32>, vector<8x8xf32> -> vector<8x8xf32>
    %cst_58 = arith.constant 0.353553385 : f32
    %91 = vector.broadcast %cst_58 : f32 to vector<8x8xf32>
    %92 = arith.mulf %90, %91 : vector<8x8xf32>
    %cst_59 = arith.constant 1.000000e+09 : f32
    %93 = vector.broadcast %cst_59 : f32 to vector<8x8xf32>
    %94 = arith.select %14, %93, %92 : vector<8x8xi1>, vector<8x8xf32>
    %c2 = arith.constant 2 : index
    %c0_60 = arith.constant 0 : index
    %c0_61 = arith.constant 0 : index
    %95 = vector.load %arg14[%c2, %c0_60, %c0_61] : memref<4x8x1xf32, #tpu.memory_space<vmem>>, vector<1x8x1xf32>
    %96 = vector.shape_cast %95 : vector<1x8x1xf32> to vector<8x1xf32>
    %cst_62 = arith.constant dense<0xFF800000> : vector<8xf32>
    %97 = vector.multi_reduction <maximumf>, %94, %cst_62 [1] : vector<8x8xf32> to vector<8xf32>
    %98 = vector.shape_cast %97 : vector<8xf32> to vector<8x1xf32>
    %99 = arith.maximumf %96, %98 : vector<8x1xf32>
    %100 = arith.subf %96, %99 : vector<8x1xf32>
    %101 = math.exp %100 : vector<8x1xf32>
    %102 = vector.broadcast %99 : vector<8x1xf32> to vector<8x8xf32>
    %103 = arith.subf %94, %102 : vector<8x8xf32>
    %104 = math.exp %103 : vector<8x8xf32>
    %c2_63 = arith.constant 2 : index
    %c0_64 = arith.constant 0 : index
    %c0_65 = arith.constant 0 : index
    %105 = vector.load %arg15[%c2_63, %c0_64, %c0_65] : memref<4x8x1xf32, #tpu.memory_space<vmem>>, vector<1x8x1xf32>
    %106 = vector.shape_cast %105 : vector<1x8x1xf32> to vector<8x1xf32>
    %107 = arith.mulf %101, %106 : vector<8x1xf32>
    %cst_66 = arith.constant dense<0.000000e+00> : vector<8xf32>
    %108 = vector.multi_reduction <add>, %104, %cst_66 [1] : vector<8x8xf32> to vector<8xf32>
    %109 = vector.shape_cast %108 : vector<8xf32> to vector<8x1xf32>
    %110 = arith.addf %107, %109 : vector<8x1xf32>
    %c2_67 = arith.constant 2 : index
    %c0_68 = arith.constant 0 : index
    %c0_69 = arith.constant 0 : index
    %111 = vector.load %arg15[%c2_67, %c0_68, %c0_69] : memref<4x8x1xf32, #tpu.memory_space<vmem>>, vector<1x8x1xf32>
    %112 = vector.shape_cast %111 : vector<1x8x1xf32> to vector<8x1xf32>
    %113 = vector.shape_cast %110 : vector<8x1xf32> to vector<1x8x1xf32>
    tpu.vector_store %arg15[%c2_67, %c0_68, %c0_69], %113 {strides = array<i32>} : memref<4x8x1xf32, #tpu.memory_space<vmem>>, vector<1x8x1xf32>,
    %c0_70 = arith.constant 0 : index
    %c16_71 = arith.constant 16 : index
    %114 = vector.load %arg16[%c0_70, %c16_71] : memref<8x32xf32, #tpu.memory_space<vmem>>, vector<8x8xf32>
    %115 = vector.broadcast %101 : vector<8x1xf32> to vector<8x8xf32>
    %116 = arith.mulf %115, %114 : vector<8x8xf32>
    %cst_72 = arith.constant dense<0.000000e+00> : vector<8x8xf32>
    %117 = tpu.matmul %104, %89, %cst_72 {dimension_numbers = #tpu.dot_dimension_numbers<[1], [0], [0], [1], [0, 0, 1, 1], [], []>} : vector<8x8xf32>, vector<8x8xf32>, vector<8x8xf32> -> vector<8x8xf32>
    %118 = arith.addf %116, %117 : vector<8x8xf32>
    %c0_73 = arith.constant 0 : index
    %c16_74 = arith.constant 16 : index
    %119 = vector.load %arg16[%c0_73, %c16_74] : memref<8x32xf32, #tpu.memory_space<vmem>>, vector<8x8xf32>
    tpu.vector_store %arg16[%c0_73, %c16_74], %118 {strides = array<i32>} : memref<8x32xf32, #tpu.memory_space<vmem>>, vector<8x8xf32>,
    %c2_75 = arith.constant 2 : index
    %c0_76 = arith.constant 0 : index
    %c0_77 = arith.constant 0 : index
    %120 = vector.load %arg14[%c2_75, %c0_76, %c0_77] : memref<4x8x1xf32, #tpu.memory_space<vmem>>, vector<1x8x1xf32>
    %121 = vector.shape_cast %120 : vector<1x8x1xf32> to vector<8x1xf32>
    %122 = vector.shape_cast %99 : vector<8x1xf32> to vector<1x8x1xf32>
    tpu.vector_store %arg14[%c2_75, %c0_76, %c0_77], %122 {strides = array<i32>} : memref<4x8x1xf32, #tpu.memory_space<vmem>>, vector<1x8x1xf32>,
    %c0_78 = arith.constant 0 : index
    %c24 = arith.constant 24 : index
    %123 = vector.load %arg13[%c0_78, %c24] : memref<8x32xf32, #tpu.memory_space<vmem>>, vector<8x8xf32>
    %124 = vector.extract_strided_slice %10 {offsets = [0, 24], sizes = [8, 8], strides = [1, 1]} : vector<8x32xf32> to vector<8x8xf32>
    %125 = vector.extract_strided_slice %11 {offsets = [0, 24], sizes = [8, 8], strides = [1, 1]} : vector<8x32xf32> to vector<8x8xf32>
    %cst_79 = arith.constant dense<0.000000e+00> : vector<8x8xf32>
    %126 = tpu.matmul %123, %124, %cst_79 {dimension_numbers = #tpu.dot_dimension_numbers<[1], [1], [0], [0], [0, 0, 1, 0], [], []>} : vector<8x8xf32>, vector<8x8xf32>, vector<8x8xf32> -> vector<8x8xf32>
    %cst_80 = arith.constant 0.353553385 : f32
    %127 = vector.broadcast %cst_80 : f32 to vector<8x8xf32>
    %128 = arith.mulf %126, %127 : vector<8x8xf32>
    %cst_81 = arith.constant 1.000000e+09 : f32
    %129 = vector.broadcast %cst_81 : f32 to vector<8x8xf32>
    %130 = arith.select %14, %129, %128 : vector<8x8xi1>, vector<8x8xf32>
    %c3 = arith.constant 3 : index
    %c0_82 = arith.constant 0 : index
    %c0_83 = arith.constant 0 : index
    %131 = vector.load %arg14[%c3, %c0_82, %c0_83] : memref<4x8x1xf32, #tpu.memory_space<vmem>>, vector<1x8x1xf32>
    %132 = vector.shape_cast %131 : vector<1x8x1xf32> to vector<8x1xf32>
    %cst_84 = arith.constant dense<0xFF800000> : vector<8xf32>
    %133 = vector.multi_reduction <maximumf>, %130, %cst_84 [1] : vector<8x8xf32> to vector<8xf32>
    %134 = vector.shape_cast %133 : vector<8xf32> to vector<8x1xf32>
    %135 = arith.maximumf %132, %134 : vector<8x1xf32>
    %136 = arith.subf %132, %135 : vector<8x1xf32>
    %137 = math.exp %136 : vector<8x1xf32>
    %138 = vector.broadcast %135 : vector<8x1xf32> to vector<8x8xf32>
    %139 = arith.subf %130, %138 : vector<8x8xf32>
    %140 = math.exp %139 : vector<8x8xf32>
    %c3_85 = arith.constant 3 : index
    %c0_86 = arith.constant 0 : index
    %c0_87 = arith.constant 0 : index
    %141 = vector.load %arg15[%c3_85, %c0_86, %c0_87] : memref<4x8x1xf32, #tpu.memory_space<vmem>>, vector<1x8x1xf32>
    %142 = vector.shape_cast %141 : vector<1x8x1xf32> to vector<8x1xf32>
    %143 = arith.mulf %137, %142 : vector<8x1xf32>
    %cst_88 = arith.constant dense<0.000000e+00> : vector<8xf32>
    %144 = vector.multi_reduction <add>, %140, %cst_88 [1] : vector<8x8xf32> to vector<8xf32>
    %145 = vector.shape_cast %144 : vector<8xf32> to vector<8x1xf32>
    %146 = arith.addf %143, %145 : vector<8x1xf32>
    %c3_89 = arith.constant 3 : index
    %c0_90 = arith.constant 0 : index
    %c0_91 = arith.constant 0 : index
    %147 = vector.load %arg15[%c3_89, %c0_90, %c0_91] : memref<4x8x1xf32, #tpu.memory_space<vmem>>, vector<1x8x1xf32>
    %148 = vector.shape_cast %147 : vector<1x8x1xf32> to vector<8x1xf32>
    %149 = vector.shape_cast %146 : vector<8x1xf32> to vector<1x8x1xf32>
    tpu.vector_store %arg15[%c3_89, %c0_90, %c0_91], %149 {strides = array<i32>} : memref<4x8x1xf32, #tpu.memory_space<vmem>>, vector<1x8x1xf32>,
    %c0_92 = arith.constant 0 : index
    %c24_93 = arith.constant 24 : index
    %150 = vector.load %arg16[%c0_92, %c24_93] : memref<8x32xf32, #tpu.memory_space<vmem>>, vector<8x8xf32>
    %151 = vector.broadcast %137 : vector<8x1xf32> to vector<8x8xf32>
    %152 = arith.mulf %151, %150 : vector<8x8xf32>
    %cst_94 = arith.constant dense<0.000000e+00> : vector<8x8xf32>
    %153 = tpu.matmul %140, %125, %cst_94 {dimension_numbers = #tpu.dot_dimension_numbers<[1], [0], [0], [1], [0, 0, 1, 1], [], []>} : vector<8x8xf32>, vector<8x8xf32>, vector<8x8xf32> -> vector<8x8xf32>
    %154 = arith.addf %152, %153 : vector<8x8xf32>
    %c0_95 = arith.constant 0 : index
    %c24_96 = arith.constant 24 : index
    %155 = vector.load %arg16[%c0_95, %c24_96] : memref<8x32xf32, #tpu.memory_space<vmem>>, vector<8x8xf32>
    tpu.vector_store %arg16[%c0_95, %c24_96], %154 {strides = array<i32>} : memref<8x32xf32, #tpu.memory_space<vmem>>, vector<8x8xf32>,
    %c3_97 = arith.constant 3 : index
    %c0_98 = arith.constant 0 : index
    %c0_99 = arith.constant 0 : index
    %156 = vector.load %arg14[%c3_97, %c0_98, %c0_99] : memref<4x8x1xf32, #tpu.memory_space<vmem>>, vector<1x8x1xf32>
    %157 = vector.shape_cast %156 : vector<1x8x1xf32> to vector<8x1xf32>
    %158 = vector.shape_cast %135 : vector<8x1xf32> to vector<1x8x1xf32>
    tpu.vector_store %arg14[%c3_97, %c0_98, %c0_99], %158 {strides = array<i32>} : memref<4x8x1xf32, #tpu.memory_space<vmem>>, vector<1x8x1xf32>,
    %c0_i32_100 = arith.constant 0 : i32
    %159 = arith.cmpi eq, %arg2, %c0_i32_100 : i32
    %160 = arith.extui %159 : i1 to i32
    %c0_i32_101 = arith.constant 0 : i32
    %161 = arith.cmpi ne, %160, %c0_i32_101 : i32
    scf.if %161 {
      %c0_102 = arith.constant 0 : index
      %c0_103 = arith.constant 0 : index
      %c0_104 = arith.constant 0 : index
      %162 = vector.load %arg15[%c0_102, %c0_103, %c0_104] : memref<4x8x1xf32, #tpu.memory_space<vmem>>, vector<1x8x1xf32>
      %163 = vector.shape_cast %162 : vector<1x8x1xf32> to vector<8x1xf32>
      %164 = tpu.reciprocal %163 : vector<8x1xf32> -> vector<8x1xf32>
      %c0_105 = arith.constant 0 : index
      %c0_106 = arith.constant 0 : index
      %165 = vector.load %arg16[%c0_105, %c0_106] : memref<8x32xf32, #tpu.memory_space<vmem>>, vector<8x8xf32>
      %166 = vector.broadcast %164 : vector<8x1xf32> to vector<8x8xf32>
      %167 = arith.mulf %165, %166 : vector<8x8xf32>
      %c0_107 = arith.constant 0 : index
      %c0_108 = arith.constant 0 : index
      %168 = vector.load %arg16[%c0_107, %c0_108] : memref<8x32xf32, #tpu.memory_space<vmem>>, vector<8x8xf32>
      tpu.vector_store %arg16[%c0_107, %c0_108], %167 {strides = array<i32>} : memref<8x32xf32, #tpu.memory_space<vmem>>, vector<8x8xf32>,
      %c1_109 = arith.constant 1 : index
      %c0_110 = arith.constant 0 : index
      %c0_111 = arith.constant 0 : index
      %169 = vector.load %arg15[%c1_109, %c0_110, %c0_111] : memref<4x8x1xf32, #tpu.memory_space<vmem>>, vector<1x8x1xf32>
      %170 = vector.shape_cast %169 : vector<1x8x1xf32> to vector<8x1xf32>
      %171 = tpu.reciprocal %170 : vector<8x1xf32> -> vector<8x1xf32>
      %c0_112 = arith.constant 0 : index
      %c8_113 = arith.constant 8 : index
      %172 = vector.load %arg16[%c0_112, %c8_113] : memref<8x32xf32, #tpu.memory_space<vmem>>, vector<8x8xf32>
      %173 = vector.broadcast %171 : vector<8x1xf32> to vector<8x8xf32>
      %174 = arith.mulf %172, %173 : vector<8x8xf32>
      %c0_114 = arith.constant 0 : index
      %c8_115 = arith.constant 8 : index
      %175 = vector.load %arg16[%c0_114, %c8_115] : memref<8x32xf32, #tpu.memory_space<vmem>>, vector<8x8xf32>
      tpu.vector_store %arg16[%c0_114, %c8_115], %174 {strides = array<i32>} : memref<8x32xf32, #tpu.memory_space<vmem>>, vector<8x8xf32>,
      %c2_116 = arith.constant 2 : index
      %c0_117 = arith.constant 0 : index
      %c0_118 = arith.constant 0 : index
      %176 = vector.load %arg15[%c2_116, %c0_117, %c0_118] : memref<4x8x1xf32, #tpu.memory_space<vmem>>, vector<1x8x1xf32>
      %177 = vector.shape_cast %176 : vector<1x8x1xf32> to vector<8x1xf32>
      %178 = tpu.reciprocal %177 : vector<8x1xf32> -> vector<8x1xf32>
      %c0_119 = arith.constant 0 : index
      %c16_120 = arith.constant 16 : index
      %179 = vector.load %arg16[%c0_119, %c16_120] : memref<8x32xf32, #tpu.memory_space<vmem>>, vector<8x8xf32>
      %180 = vector.broadcast %178 : vector<8x1xf32> to vector<8x8xf32>
      %181 = arith.mulf %179, %180 : vector<8x8xf32>
      %c0_121 = arith.constant 0 : index
      %c16_122 = arith.constant 16 : index
      %182 = vector.load %arg16[%c0_121, %c16_122] : memref<8x32xf32, #tpu.memory_space<vmem>>, vector<8x8xf32>
      tpu.vector_store %arg16[%c0_121, %c16_122], %181 {strides = array<i32>} : memref<8x32xf32, #tpu.memory_space<vmem>>, vector<8x8xf32>,
      %c3_123 = arith.constant 3 : index
      %c0_124 = arith.constant 0 : index
      %c0_125 = arith.constant 0 : index
      %183 = vector.load %arg15[%c3_123, %c0_124, %c0_125] : memref<4x8x1xf32, #tpu.memory_space<vmem>>, vector<1x8x1xf32>
      %184 = vector.shape_cast %183 : vector<1x8x1xf32> to vector<8x1xf32>
      %185 = tpu.reciprocal %184 : vector<8x1xf32> -> vector<8x1xf32>
      %c0_126 = arith.constant 0 : index
      %c24_127 = arith.constant 24 : index
      %186 = vector.load %arg16[%c0_126, %c24_127] : memref<8x32xf32, #tpu.memory_space<vmem>>, vector<8x8xf32>
      %187 = vector.broadcast %185 : vector<8x1xf32> to vector<8x8xf32>
      %188 = arith.mulf %186, %187 : vector<8x8xf32>
      %c0_128 = arith.constant 0 : index
      %c24_129 = arith.constant 24 : index
      %189 = vector.load %arg16[%c0_128, %c24_129] : memref<8x32xf32, #tpu.memory_space<vmem>>, vector<8x8xf32>
      tpu.vector_store %arg16[%c0_128, %c24_129], %188 {strides = array<i32>} : memref<8x32xf32, #tpu.memory_space<vmem>>, vector<8x8xf32>,
      %c0_130 = arith.constant 0 : index
      %c0_131 = arith.constant 0 : index
      %190 = vector.load %arg16[%c0_130, %c0_131] : memref<8x32xf32, #tpu.memory_space<vmem>>, vector<8x32xf32>
      %c0_132 = arith.constant 0 : index
      %c0_133 = arith.constant 0 : index
      %191 = vector.load %arg9[%c0_132, %c0_133] : memref<32x32xf32, #tpu.memory_space<vmem>>, vector<32x32xf32>
      %cst_134 = arith.constant dense<0.000000e+00> : vector<8x32xf32>
      %192 = tpu.matmul %190, %191, %cst_134 {dimension_numbers = #tpu.dot_dimension_numbers<[1], [0], [0], [1], [0, 0, 1, 1], [], []>} : vector<8x32xf32>, vector<32x32xf32>, vector<8x32xf32> -> vector<8x32xf32>
      %c0_135 = arith.constant 0 : index
      %c0_136 = arith.constant 0 : index
      %193 = vector.load %arg10[%c0_135, %c0_136] : memref<1x32xf32, #tpu.memory_space<vmem>>, vector<1x32xf32>
      %194 = vector.broadcast %193 : vector<1x32xf32> to vector<8x32xf32>
      %195 = arith.addf %192, %194 : vector<8x32xf32>
      %c0_137 = arith.constant 0 : index
      %c0_138 = arith.constant 0 : index
      %c0_139 = arith.constant 0 : index
      %196 = vector.load %arg12[%c0_137, %c0_138, %c0_139] : memref<1x8x32xf32, #tpu.memory_space<vmem>>, vector<1x8x32xf32>
      %197 = vector.shape_cast %196 : vector<1x8x32xf32> to vector<8x32xf32>
      %198 = vector.shape_cast %195 : vector<8x32xf32> to vector<1x8x32xf32>
      tpu.vector_store %arg12[%c0_137, %c0_138, %c0_139], %198 {strides = array<i32>} : memref<1x8x32xf32, #tpu.memory_space<vmem>>, vector<1x8x32xf32>,
    } else {
    }
    return
  }
  func.func @transform_0(%arg0: i32, %arg1: i32, %arg2: i32) -> (i32, i32, i32) {
    %c0_i32 = arith.constant 0 : i32
    %c0_i32_0 = arith.constant 0 : i32
    return %arg0, %arg1, %c0_i32 : i32, i32, i32
  }
  func.func @transform_1(%arg0: i32, %arg1: i32, %arg2: i32) -> (i32, i32, i32) {
    %c0_i32 = arith.constant 0 : i32
    %c0_i32_0 = arith.constant 0 : i32
    return %arg0, %arg2, %c0_i32 : i32, i32, i32
  }
  func.func @transform_2(%arg0: i32, %arg1: i32, %arg2: i32) -> (i32, i32) {
    %c0_i32 = arith.constant 0 : i32
    %c0_i32_0 = arith.constant 0 : i32
    %c0_i32_1 = arith.constant 0 : i32
    return %c0_i32, %c0_i32_0 : i32, i32
  }
  func.func @transform_3(%arg0: i32, %arg1: i32, %arg2: i32) -> (i32, i32) {
    %c0_i32 = arith.constant 0 : i32
    %c0_i32_0 = arith.constant 0 : i32
    %c0_i32_1 = arith.constant 0 : i32
    return %c0_i32, %c0_i32_0 : i32, i32
  }
  func.func @transform_4(%arg0: i32, %arg1: i32, %arg2: i32) -> (i32, i32) {
    %c0_i32 = arith.constant 0 : i32
    %c0_i32_0 = arith.constant 0 : i32
    %c0_i32_1 = arith.constant 0 : i32
    return %c0_i32, %c0_i32_0 : i32, i32
  }
  func.func @transform_5(%arg0: i32, %arg1: i32, %arg2: i32) -> (i32, i32) {
    %c0_i32 = arith.constant 0 : i32
    %c0_i32_0 = arith.constant 0 : i32
    %c0_i32_1 = arith.constant 0 : i32
    return %c0_i32, %c0_i32_0 : i32, i32
  }
  func.func @transform_6(%arg0: i32, %arg1: i32, %arg2: i32) -> (i32, i32) {
    %c0_i32 = arith.constant 0 : i32
    %c0_i32_0 = arith.constant 0 : i32
    %c0_i32_1 = arith.constant 0 : i32
    return %c0_i32, %c0_i32_0 : i32, i32
  }
  func.func @transform_7(%arg0: i32, %arg1: i32, %arg2: i32) -> (i32, i32) {
    %c0_i32 = arith.constant 0 : i32
    %c0_i32_0 = arith.constant 0 : i32
    %c0_i32_1 = arith.constant 0 : i32
    return %c0_i32, %c0_i32_0 : i32, i32
  }
  func.func @transform_8(%arg0: i32, %arg1: i32, %arg2: i32) -> (i32, i32) {
    %c0_i32 = arith.constant 0 : i32
    return %arg1, %arg2 : i32, i32
  }
  func.func @transform_9(%arg0: i32, %arg1: i32, %arg2: i32) -> (i32, i32, i32) {
    %c0_i32 = arith.constant 0 : i32
    %c0_i32_0 = arith.constant 0 : i32
    return %arg0, %arg1, %c0_i32 : i32, i32, i32
  }
}

</mosaic_0001>

<llo_original>
// kernel: tpu_custom_call.1
$region0: #{tpu_custom_call.1}
  #allocation0 [shape = 'u32[]', space=smem, size = 0x4, offset = 0x4, fixed_abs, tag = 'smem constant byte address 0x4 - core index']
  #allocation1 [shape = 'u32[144,128]{1,0:T(1,128)}', space=vmem, size = 0x12000, scoped, tag = 'internal scratch']
  #allocation2 [shape = 'f32[8,32]{1,0:T(8,128)}', space=vmem, size = 0x1000, scoped, tag = 'scratch operand']
  #allocation3 [shape = 'f32[4,8,1]{2,1,0:T(8,128)}', space=vmem, size = 0x4000, scoped, tag = 'scratch operand']
  #allocation4 [shape = 'f32[4,8,1]{2,1,0:T(8,128)}', space=vmem, size = 0x4000, scoped, tag = 'scratch operand']
  #allocation5 [shape = 'f32[8,32]{1,0:T(8,128)}', space=vmem, size = 0x1000, scoped, tag = 'scratch operand']
  %s0 = inlined_call_operand.hbm [shape: f32[2,8,32], index: 0, kind: input, shape index: {}]
  %s1 = inlined_call_operand.hbm [shape: f32[2,8,32], index: 1, kind: input, shape index: {}]
  %s2 = inlined_call_operand.hbm [shape: f32[32,64], index: 2, kind: input, shape index: {}]
  %s3 = inlined_call_operand.vmem [shape: f32[1,64], index: 3, kind: input, shape index: {}]
  %s4 = inlined_call_operand.hbm [shape: f32[32,32], index: 4, kind: input, shape index: {}]
  %s5 = inlined_call_operand.vmem [shape: f32[1,32], index: 5, kind: input, shape index: {}]
  %s6 = inlined_call_operand.hbm [shape: f32[32,32], index: 6, kind: input, shape index: {}]
  %s7 = inlined_call_operand.vmem [shape: f32[1,32], index: 7, kind: input, shape index: {}]
  %s8 = inlined_call_operand.vmem [shape: s32[8,8], index: 8, kind: input, shape index: {}]
  %s9 = inlined_call_operand.hbm [shape: f32[2,8,32], index: 9, kind: output, shape index: {}]
  %s10 = sld [smem:[#allocation0]]
  $region97: #{tpu_custom_call.1} parent=0
    _
  %s12 = ssub.s32 1, %s10
  %s13 = scalar_select 0, %s12, %s10
  $region1: #{tpu_custom_call.1} parent=0
    #allocation6 [shape = 'u8[8192]{0}', space=vmem, size = 0x2000, scoped, tag = 'input window, operand 0']
    #allocation7 [shape = 's32[2]{0}', space=sflag, size = 0x8, scoped, tag = 'scoped memory for tpu_custom_call.1']
    #allocation8 [shape = 's32[2]{0}', space=sflag, size = 0x8, scoped, tag = 'scoped memory for tpu_custom_call.1']
    #allocation9 [shape = 'u8[8192]{0}', space=vmem, size = 0x2000, scoped, tag = 'input window, operand 1']
    #allocation10 [shape = 's32[2]{0}', space=sflag, size = 0x8, scoped, tag = 'scoped memory for tpu_custom_call.1']
    #allocation11 [shape = 'u8[16384]{0}', space=vmem, size = 0x4000, scoped, tag = 'input window, operand 2, single buffered']
    #allocation12 [shape = 'u8[16384]{0}', space=vmem, size = 0x4000, scoped, tag = 'input window, operand 4, single buffered']
    #allocation13 [shape = 's32[1]{0}', space=sflag, size = 0x4, scoped, tag = 'scoped memory for tpu_custom_call.1']
    #allocation14 [shape = 'u8[16384]{0}', space=vmem, size = 0x4000, scoped, tag = 'input window, operand 6, single buffered']
    #allocation15 [shape = 'u8[8192]{0}', space=vmem, size = 0x2000, scoped, tag = 'output window, operand 0']
    %14 = vsyncpa [#allocation7], 0
    %s15 = scalar_lea.sflag [#allocation7], 1
    %16 = vsyncpa %s15, 0
    %17 = vsyncpa [#allocation10], 0
    %s18 = scalar_lea.sflag [#allocation10], 1
    %19 = vsyncpa %s18, 0
    %20 = vsyncpa [#allocation13], 0
    %21 = vsyncpa [#allocation8], 0
    %s22 = scalar_lea.sflag [#allocation8], 1
    %23 = vsyncpa %s22, 0
    loop: start=0, step=1, limit=4
    $region2: #{tpu_custom_call.1} parent=1 // loop_pre_header
      _
    $region3: #{tpu_custom_call.1} parent=1 // loop_header
      %s25 = sphi 0, %s29
      %p26 = scmp.ge.s32.totalorder %s25, 4
      %s32 = sphi 0, %s51
      %s33 = sphi 0, %s47
      %s34 = sphi 0, %s43
      %s35 = sphi 0, %s32
      %s36 = sphi 0, %s33
      %s37 = sphi 0, %s34
      %s38 = sphi 0, %s35
      %s39 = sphi 0, %s36
      %s40 = sphi 0, %s37
      %s56 = sphi 0, %s58
      %s59 = sphi 0, %s56
      %s60 = sphi 0, %s59
      %s76 = sphi 0, %s60
      %s84 = sphi 0, %s86
      %s87 = sphi 0, %s84
      %s88 = sphi 0, %s87
      %s104 = sphi 0, %s88
      %s108 = sphi 0, %s108
      %s110 = sphi 0, %s108
      %s111 = sphi 0, %s110
      %s125 = sphi 0, %s111
      %s129 = sphi 0, %s129
      %s131 = sphi 0, %s129
      %s132 = sphi 0, %s131
      %s146 = sphi 0, %s132
      %s150 = sphi 0, %s150
      %s152 = sphi 0, %s150
      %s153 = sphi 0, %s152
      %s167 = sphi 0, %s153
      %s171 = sphi 0, %s171
      %s173 = sphi 0, %s171
      %s174 = sphi 0, %s173
      %s188 = sphi 0, %s174
      %s192 = sphi 0, %s192
      %s194 = sphi 0, %s192
      %s195 = sphi 0, %s194
      %s209 = sphi 0, %s195
      %s213 = sphi 0, %s213
      %s215 = sphi 0, %s213
      %s216 = sphi 0, %s215
      %s230 = sphi 0, %s216
      %s238 = sphi 0, %s240
      %s241 = sphi 0, %s238
      %s242 = sphi 0, %s241
      %s258 = sphi 0, %s242
      %s266 = sphi 0, %s268
      %s269 = sphi 0, %s266
      %s270 = sphi 0, %s269
      %s286 = sphi 0, %s270
    $region4: #{tpu_custom_call.1} parent=1 // loop_header_branch
      %28 = sbr.rel (%p26) target = $region8
    $region5: #{tpu_custom_call.1} parent=1 // loop_body
      %s30 = ssub.s32 %s25, 1
      %s31 = ssub.s32 %s25, 2
      %s41 = sadd.s32 1, %s34
      %p42 = scmp.ge.s32.totalorder %s41, 1
      %s43 = scalar_select %p42, 0, %s41
      %s44 = sadd.s32 1, %s33
      %s45 = scalar_select %p42, %s44, %s33
      %p46 = scmp.ge.s32.totalorder %s45, 1
      %s47 = scalar_select %p46, 0, %s45
      %s48 = sadd.s32 1, %s32
      %s49 = scalar_select %p46, %s48, %s32
      %p50 = scmp.ge.s32.totalorder %s49, 2
      %s51 = scalar_select %p50, 0, %s49
      %s52 = ssub.s32 %s32, %s51
      %s53 = ssub.s32 %s33, %s47
      %s54 = sor.u32 %s52, %s53
      %p55 = scmp.eq.s32.totalorder %s54, 0
      %s57 = sadd.s32 %s56, 1
      %s58 = scalar_select %p55, %s56, %s57
      %p61 = pneg %p55
      %p62 = scmp.eq.s32.totalorder %s25, 1
      %p63 = por %p61, %p62
      %p64 = scmp.ne.s32.totalorder %s56, %s59
      %p65 = scmp.eq.s32.totalorder %s25, 0
      %p66 = por %p64, %p65
      %p67 = scmp.ne.s32.totalorder %s56, %s59
      %p68 = scmp.eq.s32.totalorder %s30, 1
      %p69 = por %p67, %p68
      %p70 = scmp.ne.s32.totalorder %s59, %s60
      %p71 = scmp.eq.s32.totalorder %s30, 0
      %p72 = por %p70, %p71
      %p73 = scmp.ne.s32.totalorder %s59, %s60
      %p74 = scmp.eq.s32.totalorder %s31, 1
      %p75 = por %p73, %p74
      %p77 = scmp.ne.s32.totalorder %s60, %s76
      %p78 = scmp.eq.s32.totalorder %s31, 0
      %p79 = por %p77, %p78
      %s80 = ssub.s32 %s32, %s51
      %s81 = ssub.s32 %s34, %s43
      %s82 = sor.u32 %s80, %s81
      %p83 = scmp.eq.s32.totalorder %s82, 0
      %s85 = sadd.s32 %s84, 1
      %s86 = scalar_select %p83, %s84, %s85
      %p89 = pneg %p83
      %p90 = scmp.eq.s32.totalorder %s25, 1
      %p91 = por %p89, %p90
      %p92 = scmp.ne.s32.totalorder %s84, %s87
      %p93 = scmp.eq.s32.totalorder %s25, 0
      %p94 = por %p92, %p93
      %p95 = scmp.ne.s32.totalorder %s84, %s87
      %p96 = scmp.eq.s32.totalorder %s30, 1
      %p97 = por %p95, %p96
      %p98 = scmp.ne.s32.totalorder %s87, %s88
      %p99 = scmp.eq.s32.totalorder %s30, 0
      %p100 = por %p98, %p99
      %p101 = scmp.ne.s32.totalorder %s87, %s88
      %p102 = scmp.eq.s32.totalorder %s31, 1
      %p103 = por %p101, %p102
      %p105 = scmp.ne.s32.totalorder %s88, %s104
      %p106 = scmp.eq.s32.totalorder %s31, 0
      %p107 = por %p105, %p106
      %s109 = sadd.s32 %s108, 1
      %p112 = scmp.eq.s32.totalorder %s25, 1
      %p113 = scmp.ne.s32.totalorder %s108, %s110
      %p114 = scmp.eq.s32.totalorder %s25, 0
      %p115 = por %p113, %p114
      %p116 = scmp.ne.s32.totalorder %s108, %s110
      %p117 = scmp.eq.s32.totalorder %s30, 1
      %p118 = por %p116, %p117
      %p119 = scmp.ne.s32.totalorder %s110, %s111
      %p120 = scmp.eq.s32.totalorder %s30, 0
      %p121 = por %p119, %p120
      %p122 = scmp.ne.s32.totalorder %s110, %s111
      %p123 = scmp.eq.s32.totalorder %s31, 1
      %p124 = por %p122, %p123
      %p126 = scmp.ne.s32.totalorder %s111, %s125
      %p127 = scmp.eq.s32.totalorder %s31, 0
      %p128 = por %p126, %p127
      %s130 = sadd.s32 %s129, 1
      %p133 = scmp.eq.s32.totalorder %s25, 1
      %p134 = scmp.ne.s32.totalorder %s129, %s131
      %p135 = scmp.eq.s32.totalorder %s25, 0
      %p136 = por %p134, %p135
      %p137 = scmp.ne.s32.totalorder %s129, %s131
      %p138 = scmp.eq.s32.totalorder %s30, 1
      %p139 = por %p137, %p138
      %p140 = scmp.ne.s32.totalorder %s131, %s132
      %p141 = scmp.eq.s32.totalorder %s30, 0
      %p142 = por %p140, %p141
      %p143 = scmp.ne.s32.totalorder %s131, %s132
      %p144 = scmp.eq.s32.totalorder %s31, 1
      %p145 = por %p143, %p144
      %p147 = scmp.ne.s32.totalorder %s132, %s146
      %p148 = scmp.eq.s32.totalorder %s31, 0
      %p149 = por %p147, %p148
      %s151 = sadd.s32 %s150, 1
      %p154 = scmp.eq.s32.totalorder %s25, 1
      %p155 = scmp.ne.s32.totalorder %s150, %s152
      %p156 = scmp.eq.s32.totalorder %s25, 0
      %p157 = por %p155, %p156
      %p158 = scmp.ne.s32.totalorder %s150, %s152
      %p159 = scmp.eq.s32.totalorder %s30, 1
      %p160 = por %p158, %p159
      %p161 = scmp.ne.s32.totalorder %s152, %s153
      %p162 = scmp.eq.s32.totalorder %s30, 0
      %p163 = por %p161, %p162
      %p164 = scmp.ne.s32.totalorder %s152, %s153
      %p165 = scmp.eq.s32.totalorder %s31, 1
      %p166 = por %p164, %p165
      %p168 = scmp.ne.s32.totalorder %s153, %s167
      %p169 = scmp.eq.s32.totalorder %s31, 0
      %p170 = por %p168, %p169
      %s172 = sadd.s32 %s171, 1
      %p175 = scmp.eq.s32.totalorder %s25, 1
      %p176 = scmp.ne.s32.totalorder %s171, %s173
      %p177 = scmp.eq.s32.totalorder %s25, 0
      %p178 = por %p176, %p177
      %p179 = scmp.ne.s32.totalorder %s171, %s173
      %p180 = scmp.eq.s32.totalorder %s30, 1
      %p181 = por %p179, %p180
      %p182 = scmp.ne.s32.totalorder %s173, %s174
      %p183 = scmp.eq.s32.totalorder %s30, 0
      %p184 = por %p182, %p183
      %p185 = scmp.ne.s32.totalorder %s173, %s174
      %p186 = scmp.eq.s32.totalorder %s31, 1
      %p187 = por %p185, %p186
      %p189 = scmp.ne.s32.totalorder %s174, %s188
      %p190 = scmp.eq.s32.totalorder %s31, 0
      %p191 = por %p189, %p190
      %s193 = sadd.s32 %s192, 1
      %p196 = scmp.eq.s32.totalorder %s25, 1
      %p197 = scmp.ne.s32.totalorder %s192, %s194
      %p198 = scmp.eq.s32.totalorder %s25, 0
      %p199 = por %p197, %p198
      %p200 = scmp.ne.s32.totalorder %s192, %s194
      %p201 = scmp.eq.s32.totalorder %s30, 1
      %p202 = por %p200, %p201
      %p203 = scmp.ne.s32.totalorder %s194, %s195
      %p204 = scmp.eq.s32.totalorder %s30, 0
      %p205 = por %p203, %p204
      %p206 = scmp.ne.s32.totalorder %s194, %s195
      %p207 = scmp.eq.s32.totalorder %s31, 1
      %p208 = por %p206, %p207
      %p210 = scmp.ne.s32.totalorder %s195, %s209
      %p211 = scmp.eq.s32.totalorder %s31, 0
      %p212 = por %p210, %p211
      %s214 = sadd.s32 %s213, 1
      %p217 = scmp.eq.s32.totalorder %s25, 1
      %p218 = scmp.ne.s32.totalorder %s213, %s215
      %p219 = scmp.eq.s32.totalorder %s25, 0
      %p220 = por %p218, %p219
      %p221 = scmp.ne.s32.totalorder %s213, %s215
      %p222 = scmp.eq.s32.totalorder %s30, 1
      %p223 = por %p221, %p222
      %p224 = scmp.ne.s32.totalorder %s215, %s216
      %p225 = scmp.eq.s32.totalorder %s30, 0
      %p226 = por %p224, %p225
      %p227 = scmp.ne.s32.totalorder %s215, %s216
      %p228 = scmp.eq.s32.totalorder %s31, 1
      %p229 = por %p227, %p228
      %p231 = scmp.ne.s32.totalorder %s216, %s230
      %p232 = scmp.eq.s32.totalorder %s31, 0
      %p233 = por %p231, %p232
      %s234 = ssub.s32 %s33, %s47
      %s235 = ssub.s32 %s34, %s43
      %s236 = sor.u32 %s234, %s235
      %p237 = scmp.eq.s32.totalorder %s236, 0
      %s239 = sadd.s32 %s238, 1
      %s240 = scalar_select %p237, %s238, %s239
      %p243 = pneg %p237
      %p244 = scmp.eq.s32.totalorder %s25, 1
      %p245 = por %p243, %p244
      %p246 = scmp.ne.s32.totalorder %s238, %s241
      %p247 = scmp.eq.s32.totalorder %s25, 0
      %p248 = por %p246, %p247
      %p249 = scmp.ne.s32.totalorder %s238, %s241
      %p250 = scmp.eq.s32.totalorder %s30, 1
      %p251 = por %p249, %p250
      %p252 = scmp.ne.s32.totalorder %s241, %s242
      %p253 = scmp.eq.s32.totalorder %s30, 0
      %p254 = por %p252, %p253
      %p255 = scmp.ne.s32.totalorder %s241, %s242
      %p256 = scmp.eq.s32.totalorder %s31, 1
      %p257 = por %p255, %p256
      %p259 = scmp.ne.s32.totalorder %s242, %s258
      %p260 = scmp.eq.s32.totalorder %s31, 0
      %p261 = por %p259, %p260
      %s262 = ssub.s32 %s32, %s51
      %s263 = ssub.s32 %s33, %s47
      %s264 = sor.u32 %s262, %s263
      %p265 = scmp.eq.s32.totalorder %s264, 0
      %s267 = sadd.s32 %s266, 1
      %s268 = scalar_select %p265, %s266, %s267
      %p271 = pneg %p265
      %p272 = scmp.eq.s32.totalorder %s25, 1
      %p273 = por %p271, %p272
      %p274 = scmp.ne.s32.totalorder %s266, %s269
      %p275 = scmp.eq.s32.totalorder %s25, 0
      %p276 = por %p274, %p275
      %p277 = scmp.ne.s32.totalorder %s266, %s269
      %p278 = scmp.eq.s32.totalorder %s30, 1
      %p279 = por %p277, %p278
      %p280 = scmp.ne.s32.totalorder %s269, %s270
      %p281 = scmp.eq.s32.totalorder %s30, 0
      %p282 = por %p280, %p281
      %p283 = scmp.ne.s32.totalorder %s269, %s270
      %p284 = scmp.eq.s32.totalorder %s31, 1
      %p285 = por %p283, %p284
      %p287 = scmp.ne.s32.totalorder %s270, %s286
      %p288 = scmp.eq.s32.totalorder %s31, 0
      %p289 = por %p287, %p288
      %p290 = scmp.le.s32.totalorder 1, %s25
      %p291 = scmp.lt.s32.totalorder %s25, 3
      %p292 = pnand %p290, %p291
      %p293 = pneg %p292
      // Predicated region
      $region9: #{tpu_custom_call.1} parent=5 // pred_check
        _
      $region10: #{tpu_custom_call.1} parent=5 // pred_check_branch
        %295 = sbr.rel (%p292) target = $region12
      $region11: #{tpu_custom_call.1} parent=5 // pred_region
        %s296 = ssub.s32 %s25, 1
        // Predicated region
        $region13: #{tpu_custom_call.1} parent=11 // pred_check
          %p297 = pneg %p121
        $region14: #{tpu_custom_call.1} parent=11 // pred_check_branch
          %299 = sbr.rel (%p297) target = $region16
        $region15: #{tpu_custom_call.1} parent=11 // pred_region
          %s301 = ssub.s32 512, 512
          %302 = vsyncadd [#allocation10], %s301
          %s303 = sshll.u32 [#allocation11], 4
          %s304 = int_to_ptr.vmem [resolvable:$true] %s303
          %309 = dma.hbm_to_vmem [thread:$0]  %s2, 512, %s304, [#allocation10], 128, 128, 8
        $region16: #{tpu_custom_call.1} parent=11 // pred_fallthru
          _
        // Predicated region
        $region17: #{tpu_custom_call.1} parent=11 // pred_check
          %p310 = pneg %p142
        $region18: #{tpu_custom_call.1} parent=11 // pred_check_branch
          %312 = sbr.rel (%p310) target = $region20
        $region19: #{tpu_custom_call.1} parent=11 // pred_region
          _
        $region20: #{tpu_custom_call.1} parent=11 // pred_fallthru
          _
        // Predicated region
        $region21: #{tpu_custom_call.1} parent=11 // pred_check
          %p313 = pneg %p163
        $region22: #{tpu_custom_call.1} parent=11 // pred_check_branch
          %315 = sbr.rel (%p313) target = $region24
        $region23: #{tpu_custom_call.1} parent=11 // pred_region
          %s317 = ssub.s32 512, 512
          %318 = vsyncadd [#allocation13], %s317
          %s319 = sshll.u32 [#allocation12], 4
          %s320 = int_to_ptr.vmem [resolvable:$true] %s319
          %325 = dma.hbm_to_vmem [thread:$0]  %s4, 512, %s320, [#allocation13], 128, 128, 8
        $region24: #{tpu_custom_call.1} parent=11 // pred_fallthru
          _
        // Predicated region
        $region25: #{tpu_custom_call.1} parent=11 // pred_check
          %p326 = pneg %p184
        $region26: #{tpu_custom_call.1} parent=11 // pred_check_branch
          %328 = sbr.rel (%p326) target = $region28
        $region27: #{tpu_custom_call.1} parent=11 // pred_region
          _
        $region28: #{tpu_custom_call.1} parent=11 // pred_fallthru
          _
        // Predicated region
        $region29: #{tpu_custom_call.1} parent=11 // pred_check
          %p329 = pneg %p205
        $region30: #{tpu_custom_call.1} parent=11 // pred_check_branch
          %331 = sbr.rel (%p329) target = $region32
        $region31: #{tpu_custom_call.1} parent=11 // pred_region
          %s333 = ssub.s32 512, 512
          %334 = vsyncadd [#allocation13], %s333
          %s335 = sshll.u32 [#allocation14], 4
          %s336 = int_to_ptr.vmem [resolvable:$true] %s335
          %341 = dma.hbm_to_vmem [thread:$0]  %s6, 512, %s336, [#allocation13], 128, 128, 8
        $region32: #{tpu_custom_call.1} parent=11 // pred_fallthru
          _
        // Predicated region
        $region33: #{tpu_custom_call.1} parent=11 // pred_check
          %p342 = pneg %p226
        $region34: #{tpu_custom_call.1} parent=11 // pred_check_branch
          %344 = sbr.rel (%p342) target = $region36
        $region35: #{tpu_custom_call.1} parent=11 // pred_region
          _
        $region36: #{tpu_custom_call.1} parent=11 // pred_fallthru
          _
        // Predicated region
        $region37: #{tpu_custom_call.1} parent=11 // pred_check
          %p345 = pneg %p254
        $region38: #{tpu_custom_call.1} parent=11 // pred_check_branch
          %347 = sbr.rel (%p345) target = $region40
        $region39: #{tpu_custom_call.1} parent=11 // pred_region
          %p348 = scmp.lt.s32.totalorder %s36, 0
          %s349 = scalar_select %p348, %s36, 0
          %p350 = scmp.lt.s32.totalorder %s37, 0
          %s351 = scalar_select %p350, %s37, 0
          %s352 = sadd.s32 %s351, %s349
          %s353 = smul.addr %s352, 8
          %s354 = scalar_lea.vmem %s8, %s353
        $region40: #{tpu_custom_call.1} parent=11 // pred_fallthru
          _
      $region12: #{tpu_custom_call.1} parent=5 // pred_fallthru
        _
      %p355 = scmp.lt.s32.totalorder %s25, 2
      // Predicated region
      $region41: #{tpu_custom_call.1} parent=5 // pred_check
        %p356 = pneg %p355
      $region42: #{tpu_custom_call.1} parent=5 // pred_check_branch
        %358 = sbr.rel (%p356) target = $region44
      $region43: #{tpu_custom_call.1} parent=5 // pred_region
        // Predicated region
        $region45: #{tpu_custom_call.1} parent=43 // pred_check
          %p359 = pneg %p66
        $region46: #{tpu_custom_call.1} parent=43 // pred_check_branch
          %361 = sbr.rel (%p359) target = $region48
        $region47: #{tpu_custom_call.1} parent=43 // pred_region
          %s362 = sand.u32 %s56, 1
          %s363 = scalar_lea.sflag [#allocation7], %s362
          %s364 = sand.u32 %s56, 1
          %s365 = smul.addr %s364, 8
          %s366 = scalar_lea.vmem [#allocation6], %s365
          %s368 = ssub.s32 128, 128
          %369 = vsyncadd %s363, %s368
          %s370 = sadd.s32 %s33, %s32
          %s371 = smul.addr %s370, 128
          %s372 = scalar_lea.hbm %s0, %s371
          %s374 = sshll.u32 %s366, 4
          %s375 = int_to_ptr.vmem [resolvable:$true] %s374
          %377 = dma.hbm_to_vmem [thread:$0]  %s372, 128, %s375, %s363
        $region48: #{tpu_custom_call.1} parent=43 // pred_fallthru
          _
        // Predicated region
        $region49: #{tpu_custom_call.1} parent=43 // pred_check
          %p378 = pneg %p94
        $region50: #{tpu_custom_call.1} parent=43 // pred_check_branch
          %380 = sbr.rel (%p378) target = $region52
        $region51: #{tpu_custom_call.1} parent=43 // pred_region
          %s381 = sand.u32 %s25, 1
          %s382 = scalar_lea.sflag [#allocation10], %s381
          %s383 = sand.u32 %s84, 1
          %s384 = smul.addr %s383, 8
          %s385 = scalar_lea.vmem [#allocation9], %s384
          %s387 = ssub.s32 128, 128
          %388 = vsyncadd %s382, %s387
          %s389 = sadd.s32 %s34, %s32
          %s390 = smul.addr %s389, 128
          %s391 = scalar_lea.hbm %s1, %s390
          %s393 = sshll.u32 %s385, 4
          %s394 = int_to_ptr.vmem [resolvable:$true] %s393
          %396 = dma.hbm_to_vmem [thread:$0]  %s391, 128, %s394, %s382
        $region52: #{tpu_custom_call.1} parent=43 // pred_fallthru
          _
      $region44: #{tpu_custom_call.1} parent=5 // pred_fallthru
        _
      %p397 = scmp.le.s32.totalorder 1, %s25
      %p398 = scmp.lt.s32.totalorder %s25, 3
      %p399 = pnand %p397, %p398
      %p400 = pneg %p399
      // Predicated region
      $region53: #{tpu_custom_call.1} parent=5 // pred_check
        _
      $region54: #{tpu_custom_call.1} parent=5 // pred_check_branch
        %402 = sbr.rel (%p399) target = $region56
      $region55: #{tpu_custom_call.1} parent=5 // pred_region
        %s403 = ssub.s32 %s25, 1
        %s404 = sand.u32 %s59, 1
        %s405 = scalar_lea.sflag [#allocation7], %s404
        %s406 = sand.u32 %s59, 1
        %s407 = smul.addr %s406, 8
        %s408 = scalar_lea.vmem [#allocation6], %s407
        // Predicated region
        $region57: #{tpu_custom_call.1} parent=55 // pred_check
          %p409 = pneg %p72
        $region58: #{tpu_custom_call.1} parent=55 // pred_check_branch
          %411 = sbr.rel (%p409) target = $region60
        $region59: #{tpu_custom_call.1} parent=55 // pred_region
          %412 = dma.done %s405, 128
        $region60: #{tpu_custom_call.1} parent=55 // pred_fallthru
          _
        %s413 = sand.u32 %s30, 1
        %s414 = scalar_lea.sflag [#allocation10], %s413
        %s415 = sand.u32 %s87, 1
        %s416 = smul.addr %s415, 8
        %s417 = scalar_lea.vmem [#allocation9], %s416
        // Predicated region
        $region61: #{tpu_custom_call.1} parent=55 // pred_check
          %p418 = pneg %p100
        $region62: #{tpu_custom_call.1} parent=55 // pred_check_branch
          %420 = sbr.rel (%p418) target = $region64
        $region63: #{tpu_custom_call.1} parent=55 // pred_region
          %421 = dma.done %s414, 128
        $region64: #{tpu_custom_call.1} parent=55 // pred_fallthru
          _
        // Predicated region
        $region65: #{tpu_custom_call.1} parent=55 // pred_check
          %p422 = pneg %p121
        $region66: #{tpu_custom_call.1} parent=55 // pred_check_branch
          %424 = sbr.rel (%p422) target = $region68
        $region67: #{tpu_custom_call.1} parent=55 // pred_region
          %425 = dma.done [#allocation10], 512
        $region68: #{tpu_custom_call.1} parent=55 // pred_fallthru
          _
        // Predicated region
        $region69: #{tpu_custom_call.1} parent=55 // pred_check
          %p426 = pneg %p163
        $region70: #{tpu_custom_call.1} parent=55 // pred_check_branch
          %428 = sbr.rel (%p426) target = $region72
        $region71: #{tpu_custom_call.1} parent=55 // pred_region
          %429 = dma.done [#allocation13], 512
        $region72: #{tpu_custom_call.1} parent=55 // pred_fallthru
          _
        // Predicated region
        $region73: #{tpu_custom_call.1} parent=55 // pred_check
          %p430 = pneg %p205
        $region74: #{tpu_custom_call.1} parent=55 // pred_check_branch
          %432 = sbr.rel (%p430) target = $region76
        $region75: #{tpu_custom_call.1} parent=55 // pred_region
          %433 = dma.done [#allocation13], 512
        $region76: #{tpu_custom_call.1} parent=55 // pred_fallthru
          _
        %s434 = sand.u32 %s59, 1
        %s435 = scalar_lea.sflag [#allocation7], %s434
        %s436 = sand.u32 %s59, 1
        %s437 = smul.addr %s436, 8
        %s438 = scalar_lea.vmem [#allocation6], %s437
        %p439 = pneg %p72
        %p440 = pneg %p69
        %s441 = sand.u32 %s30, 1
        %s442 = scalar_lea.sflag [#allocation10], %s441
        %s443 = sand.u32 %s87, 1
        %s444 = smul.addr %s443, 8
        %s445 = scalar_lea.vmem [#allocation9], %s444
        %p446 = pneg %p100
        %p447 = pneg %p97
        %p448 = pneg %p121
        %p449 = pneg %p118
        %p450 = pneg %p142
        %p451 = pneg %p139
        %p452 = pneg %p163
        %p453 = pneg %p160
        %p454 = pneg %p184
        %p455 = pneg %p181
        %p456 = pneg %p205
        %p457 = pneg %p202
        %p458 = pneg %p226
        %p459 = pneg %p223
        %p460 = scmp.lt.s32.totalorder %s36, 0
        %s461 = scalar_select %p460, %s36, 0
        %p462 = scmp.lt.s32.totalorder %s37, 0
        %s463 = scalar_select %p462, %s37, 0
        %s464 = sadd.s32 %s463, %s461
        %s465 = smul.addr %s464, 8
        %s466 = scalar_lea.vmem %s8, %s465
        %p467 = pneg %p254
        %p468 = pneg %p251
        %p469 = pneg %p282
        %p470 = pneg %p279
        %s471 = sand.u32 %s269, 1
        %s472 = scalar_lea.sflag [#allocation8], %s471
        %s473 = sand.u32 %s269, 1
        %s474 = smul.addr %s473, 8
        %s475 = scalar_lea.vmem [#allocation15], %s474
        %p476 = scmp.lt.s32.totalorder %s36, 0
        %s477 = scalar_select %p476, %s36, 0
        %p478 = scmp.lt.s32.totalorder %s37, 0
        %s479 = scalar_select %p478, %s37, 0
        %s480 = sadd.s32 %s479, %s477
        %s481 = smul.addr %s480, 8
        %s482 = scalar_lea.vmem %s8, %s481
        %p483 = scmp.eq.s32.totalorder %s37, 0
        // Predicated region
        $region77: #{tpu_custom_call.1} parent=55 // pred_check
          %p484 = pneg %p483
        $region78: #{tpu_custom_call.1} parent=55 // pred_check_branch
          %486 = sbr.rel (%p484) target = $region80
        $region79: #{tpu_custom_call.1} parent=55 // pred_region
          %v487 = vld [vmem:[%s408] sm:$0xff]
          %v488 = vld [vmem:[#allocation12] sm:$0xff]
          %v489 = vld [vmem:[#allocation12 + $0x8] sm:$0xff]
          %v490 = vld [vmem:[#allocation12 + $0x10] sm:$0xff]
          %v491 = vld [vmem:[#allocation12 + $0x18] sm:$0xff]
          %v492 = vld [vmem:[%s5] sm:$0x1]
          %v494 = vlaneseq
          %v495 = vshrl.u32 %v494, 7
          %v496 = vsub.s32 0, %v495
          %v497 = vrot.slane %v492, %v496
          %vm499 = vcmask 261120
          %v501 = vsel %vm499, %v487, 0
          %503 = vmatprep.subr.mxu0 0.0
          %504 = vmatpush1.msra.mxu0 %v488
          %505 = vmatprep.subr.mxu0 0.0
          %506 = vmatpush1.msra.mxu0 %v489
          %507 = vmatprep.subr.mxu0 0.0
          %508 = vmatpush1.msra.mxu0 %v490
          %509 = vmatprep.subr.mxu0 0.0
          %510 = vmatpush1.msra.mxu0 %v491
          %511 = vmatprep.subr.mxu0 0.0
          %512 = vmatpush1.msra.mxu0 0.0
          %513 = vmatprep.subr.mxu0 0.0
          %514 = vmatpush1.msra.mxu0 0.0
          %515 = vmatprep.subr.mxu0 0.0
          %516 = vmatpush1.msra.mxu0 0.0
          %517 = vmatprep.subr.mxu0 0.0
          %518 = vmatpush1.msra.mxu0 0.0
          %519 = vmatprep.subr.mxu0 0.0
          %520 = vmatpush1.msra.mxu0 0.0
          %521 = vmatprep.subr.mxu0 0.0
          %522 = vmatpush1.msra.mxu0 0.0
          %523 = vmatprep.subr.mxu0 0.0
          %524 = vmatpush1.msra.mxu0 0.0
          %525 = vmatprep.subr.mxu0 0.0
          %526 = vmatpush1.msra.mxu0 0.0
          %527 = vmatprep.subr.mxu0 0.0
          %528 = vmatpush1.msra.mxu0 0.0
          %529 = vmatprep.subr.mxu0 0.0
          %530 = vmatpush1.msra.mxu0 0.0
          %531 = vmatprep.subr.mxu0 0.0
          %532 = vmatpush1.msra.mxu0 0.0
          %533 = vmatprep.subr.mxu0 0.0
          %534 = vmatpush1.msra.mxu0 0.0
          %535 = vmatprep.subr.mxu0 0.0
          %536 = vmatpush1.msra.mxu0 0.0
          %537 = vmatprep.subr.mxu0 0.0
          %538 = vmatpush1.msra.mxu0 0.0
          %539 = vmatprep.subr.mxu0 0.0
          %540 = vmatpush1.msra.mxu0 0.0
          %541 = vmatprep.subr.mxu0 0.0
          %542 = vmatpush1.msra.mxu0 0.0
          %543 = vmatprep.subr.mxu0 0.0
          %544 = vmatpush1.msra.mxu0 0.0
          %545 = vmatprep.subr.mxu0 0.0
          %546 = vmatpush1.msra.mxu0 0.0
          %547 = vmatprep.subr.mxu0 0.0
          %548 = vmatpush1.msra.mxu0 0.0
          %549 = vmatprep.subr.mxu0 0.0
          %550 = vmatpush1.msra.mxu0 0.0
          %551 = vmatprep.subr.mxu0 0.0
          %552 = vmatpush1.msra.mxu0 0.0
          %553 = vmatprep.subr.mxu0 0.0
          %554 = vmatpush1.msra.mxu0 0.0
          %555 = vmatprep.subr.mxu0 0.0
          %556 = vmatpush1.msra.mxu0 0.0
          %557 = vmatprep.subr.mxu0 0.0
          %558 = vmatpush1.msra.mxu0 0.0
          %559 = vmatprep.subr.mxu0 0.0
          %560 = vmatpush1.msra.mxu0 0.0
          %561 = vmatprep.subr.mxu0 0.0
          %562 = vmatpush1.msra.mxu0 0.0
          %563 = vmatprep.subr.mxu0 0.0
          %564 = vmatpush1.msra.mxu0 0.0
          %565 = vmatprep.subr.mxu0 0.0
          %566 = vmatpush1.msra.mxu0 0.0
          %567 = vmatprep.mubr.f32.mxu0 0.0
          %568 = vmatmul.mubr.f32.gmra.mrb[0].mxu0 %v501
          %v569 = vpop.f32.mrb[0].mxu0
          %v570 = vadd.f32 %v497, %v569
          %v571 = vpop.f32.mrb[0].mxu0
          %572 = vdwg.mxu0
          %573 = vst.msk [vmem:[#allocation2] sm:$0xff] %vm499, %v570
          %vm574 = vcmask 7168
          %575 = vst.msk [vmem:[#allocation3] sm:$0xff] %vm574, -inf
          %576 = vst.msk [vmem:[#allocation3 + $0x8] sm:$0xff] %vm574, -inf
          %577 = vst.msk [vmem:[#allocation3 + $0x10] sm:$0xff] %vm574, -inf
          %578 = vst.msk [vmem:[#allocation3 + $0x18] sm:$0xff] %vm574, -inf
          %579 = vst.msk [vmem:[#allocation4] sm:$0xff] %vm574, 0.0
          %580 = vst.msk [vmem:[#allocation4 + $0x8] sm:$0xff] %vm574, 0.0
          %581 = vst.msk [vmem:[#allocation4 + $0x10] sm:$0xff] %vm574, 0.0
          %582 = vst.msk [vmem:[#allocation4 + $0x18] sm:$0xff] %vm574, 0.0
          %583 = vst.msk [vmem:[#allocation5] sm:$0xff] %vm499, 0.0
        $region80: #{tpu_custom_call.1} parent=55 // pred_fallthru
          _
        %v584 = vld [vmem:[%s417] sm:$0xff]
        %v585 = vld [vmem:[#allocation11] sm:$0xff]
        %v586 = vld [vmem:[#allocation11 + $0x8] sm:$0xff]
        %v587 = vld [vmem:[#allocation11 + $0x10] sm:$0xff]
        %v588 = vld [vmem:[#allocation11 + $0x18] sm:$0xff]
        %v589 = vld [vmem:[%s3] sm:$0x1]
        %v591 = vlaneseq
        %v592 = vshrl.u32 %v591, 7
        %v593 = vsub.s32 0, %v592
        %v594 = vrot.slane %v589, %v593
        %vm596 = vcmask 261120
        %v598 = vsel %vm596, %v584, 0
        %600 = vmatprep.subr.mxu0 0.0
        %601 = vmatpush1.msra.mxu0 %v585
        %602 = vmatprep.subr.mxu0 0.0
        %603 = vmatpush1.msra.mxu0 %v586
        %604 = vmatprep.subr.mxu0 0.0
        %605 = vmatpush1.msra.mxu0 %v587
        %606 = vmatprep.subr.mxu0 0.0
        %607 = vmatpush1.msra.mxu0 %v588
        %608 = vmatprep.subr.mxu0 0.0
        %609 = vmatpush1.msra.mxu0 0.0
        %610 = vmatprep.subr.mxu0 0.0
        %611 = vmatpush1.msra.mxu0 0.0
        %612 = vmatprep.subr.mxu0 0.0
        %613 = vmatpush1.msra.mxu0 0.0
        %614 = vmatprep.subr.mxu0 0.0
        %615 = vmatpush1.msra.mxu0 0.0
        %616 = vmatprep.subr.mxu0 0.0
        %617 = vmatpush1.msra.mxu0 0.0
        %618 = vmatprep.subr.mxu0 0.0
        %619 = vmatpush1.msra.mxu0 0.0
        %620 = vmatprep.subr.mxu0 0.0
        %621 = vmatpush1.msra.mxu0 0.0
        %622 = vmatprep.subr.mxu0 0.0
        %623 = vmatpush1.msra.mxu0 0.0
        %624 = vmatprep.subr.mxu0 0.0
        %625 = vmatpush1.msra.mxu0 0.0
        %626 = vmatprep.subr.mxu0 0.0
        %627 = vmatpush1.msra.mxu0 0.0
        %628 = vmatprep.subr.mxu0 0.0
        %629 = vmatpush1.msra.mxu0 0.0
        %630 = vmatprep.subr.mxu0 0.0
        %631 = vmatpush1.msra.mxu0 0.0
        %632 = vmatprep.subr.mxu0 0.0
        %633 = vmatpush1.msra.mxu0 0.0
        %634 = vmatprep.subr.mxu0 0.0
        %635 = vmatpush1.msra.mxu0 0.0
        %636 = vmatprep.subr.mxu0 0.0
        %637 = vmatpush1.msra.mxu0 0.0
        %638 = vmatprep.subr.mxu0 0.0
        %639 = vmatpush1.msra.mxu0 0.0
        %640 = vmatprep.subr.mxu0 0.0
        %641 = vmatpush1.msra.mxu0 0.0
        %642 = vmatprep.subr.mxu0 0.0
        %643 = vmatpush1.msra.mxu0 0.0
        %644 = vmatprep.subr.mxu0 0.0
        %645 = vmatpush1.msra.mxu0 0.0
        %646 = vmatprep.subr.mxu0 0.0
        %647 = vmatpush1.msra.mxu0 0.0
        %648 = vmatprep.subr.mxu0 0.0
        %649 = vmatpush1.msra.mxu0 0.0
        %650 = vmatprep.subr.mxu0 0.0
        %651 = vmatpush1.msra.mxu0 0.0
        %652 = vmatprep.subr.mxu0 0.0
        %653 = vmatpush1.msra.mxu0 0.0
        %654 = vmatprep.subr.mxu0 0.0
        %655 = vmatpush1.msra.mxu0 0.0
        %656 = vmatprep.subr.mxu0 0.0
        %657 = vmatpush1.msra.mxu0 0.0
        %658 = vmatprep.subr.mxu0 0.0
        %659 = vmatpush1.msra.mxu0 0.0
        %660 = vmatprep.subr.mxu0 0.0
        %661 = vmatpush1.msra.mxu0 0.0
        %662 = vmatprep.subr.mxu0 0.0
        %663 = vmatpush1.msra.mxu0 0.0
        %664 = vmatprep.mubr.f32.mxu0 0.0
        %665 = vmatmul.mubr.f32.gmra.mrb[0].mxu0 %v598
        %v666 = vpop.f32.mrb[0].mxu0
        %v667 = vadd.f32 %v594, %v666
        %v668 = vpop.f32.mrb[0].mxu0
        %669 = vdwg.mxu0
        %v670 = vld [vmem:[%s482] sm:$0xff]
        %vm671 = vcmp.ne.s32.totalorder %v670, 0
        %v672 = vld [vmem:[#allocation2] sm:$0xff]
        %vm673 = vcmask 64512
        %v675 = vsel %vm673, %v672, 0
        %v678 = vsel %vm673, %v667, 0
        %680 = vmatprep.subr.mxu0 0.0
        %681 = vmatpush1.xpose.msra.mxu0 %v678
        %682 = vmatprep.subr.mxu0 0.0
        %683 = vmatpush1.xpose.msra.mxu0 0.0
        %684 = vmatprep.subr.mxu0 0.0
        %685 = vmatpush1.xpose.msra.mxu0 0.0
        %686 = vmatprep.subr.mxu0 0.0
        %687 = vmatpush1.xpose.msra.mxu0 0.0
        %688 = vmatprep.subr.mxu0 0.0
        %689 = vmatpush1.xpose.msra.mxu0 0.0
        %690 = vmatprep.subr.mxu0 0.0
        %691 = vmatpush1.xpose.msra.mxu0 0.0
        %692 = vmatprep.subr.mxu0 0.0
        %693 = vmatpush1.xpose.msra.mxu0 0.0
        %694 = vmatprep.subr.mxu0 0.0
        %695 = vmatpush1.xpose.msra.mxu0 0.0
        %696 = vmatprep.subr.mxu0 0.0
        %697 = vmatpush1.xpose.msra.mxu0 0.0
        %698 = vmatprep.subr.mxu0 0.0
        %699 = vmatpush1.xpose.msra.mxu0 0.0
        %700 = vmatprep.subr.mxu0 0.0
        %701 = vmatpush1.xpose.msra.mxu0 0.0
        %702 = vmatprep.subr.mxu0 0.0
        %703 = vmatpush1.xpose.msra.mxu0 0.0
        %704 = vmatprep.subr.mxu0 0.0
        %705 = vmatpush1.xpose.msra.mxu0 0.0
        %706 = vmatprep.subr.mxu0 0.0
        %707 = vmatpush1.xpose.msra.mxu0 0.0
        %708 = vmatprep.subr.mxu0 0.0
        %709 = vmatpush1.xpose.msra.mxu0 0.0
        %710 = vmatprep.subr.mxu0 0.0
        %711 = vmatpush1.xpose.msra.mxu0 0.0
        %712 = vmatprep.subr.mxu0 0.0
        %713 = vmatpush1.xpose.msra.mxu0 0.0
        %714 = vmatprep.subr.mxu0 0.0
        %715 = vmatpush1.xpose.msra.mxu0 0.0
        %716 = vmatprep.subr.mxu0 0.0
        %717 = vmatpush1.xpose.msra.mxu0 0.0
        %718 = vmatprep.subr.mxu0 0.0
        %719 = vmatpush1.xpose.msra.mxu0 0.0
        %720 = vmatprep.subr.mxu0 0.0
        %721 = vmatpush1.xpose.msra.mxu0 0.0
        %722 = vmatprep.subr.mxu0 0.0
        %723 = vmatpush1.xpose.msra.mxu0 0.0
        %724 = vmatprep.subr.mxu0 0.0
        %725 = vmatpush1.xpose.msra.mxu0 0.0
        %726 = vmatprep.subr.mxu0 0.0
        %727 = vmatpush1.xpose.msra.mxu0 0.0
        %728 = vmatprep.subr.mxu0 0.0
        %729 = vmatpush1.xpose.msra.mxu0 0.0
        %730 = vmatprep.subr.mxu0 0.0
        %731 = vmatpush1.xpose.msra.mxu0 0.0
        %732 = vmatprep.subr.mxu0 0.0
        %733 = vmatpush1.xpose.msra.mxu0 0.0
        %734 = vmatprep.subr.mxu0 0.0
        %735 = vmatpush1.xpose.msra.mxu0 0.0
        %736 = vmatprep.subr.mxu0 0.0
        %737 = vmatpush1.xpose.msra.mxu0 0.0
        %738 = vmatprep.subr.mxu0 0.0
        %739 = vmatpush1.xpose.msra.mxu0 0.0
        %740 = vmatprep.subr.mxu0 0.0
        %741 = vmatpush1.xpose.msra.mxu0 0.0
        %742 = vmatprep.subr.mxu0 0.0
        %743 = vmatpush1.xpose.msra.mxu0 0.0
        %744 = vmatprep.mubr.f32.mxu0 0.0
        %745 = vmatmul.mubr.f32.gmra.mrb[0].mxu0 %v675
        %v746 = vpop.f32.mrb[0].mxu0
        %v747 = vadd.f32 0.0, %v746
        %v748 = vpop.f32.mrb[0].mxu0
        %749 = vdwg.mxu0
        %v750 = vmul.f32 %v747, 0.35355338
        %v751 = vsel %vm671, 1e+09, %v750
        %v752 = vld [vmem:[#allocation3] sm:$0xff]
        %v753 = vsel %vm673, %v751, -inf
        %754 = vmax.xlane.f32.xlu0 %v753
        %v755 = vpop.xlane.xlu0 %754
        %v756 = vmax.f32 %v752, %v755
        %v757 = vsub.f32 %v752, %v756
        %v758 = vmul.f32 %v757, 1.442695
        %v759 = vpow.pop %v758
        %761 = vset.pattern.permute.xlu0 0
        %762 = vperm.xlu0 %761, %v756
        %v763 = vpop.permute.xlu0 %762
        %v765 = vsub.f32 %v751, %v763
        %v766 = vmul.f32 %v765, 1.442695
        %v767 = vpow.pop %v766
        %v768 = vld [vmem:[#allocation4] sm:$0xff]
        %v769 = vmul.f32 %v759, %v768
        %v770 = vsel %vm673, %v767, 0.0
        %771 = vadd.xlane.f32.xlu0 %v770
        %v772 = vpop.xlane.xlu0 %771
        %v773 = vadd.f32 %v769, %v772
        %vm774 = vcmask 7168
        %775 = vst.msk [vmem:[#allocation4] sm:$0xff] %vm774, %v773
        %v776 = vld [vmem:[#allocation5] sm:$0xff]
        %778 = vset.pattern.permute.xlu0 0
        %779 = vperm.xlu0 %778, %v759
        %v780 = vpop.permute.xlu0 %779
        %v782 = vmul.f32 %v780, %v776
        %783 = vrot.lane.b32.xlu0 %v667, 96
        %v784 = vpop.permute.xlu0 %783
        %v787 = vsel %vm673, %v767, 0
        %789 = vmatprep.subr.mxu0 0.0
        %790 = vmatpush1.msra.mxu0 %v784
        %791 = vmatprep.subr.mxu0 0.0
        %792 = vmatpush1.msra.mxu0 0.0
        %793 = vmatprep.subr.mxu0 0.0
        %794 = vmatpush1.msra.mxu0 0.0
        %795 = vmatprep.subr.mxu0 0.0
        %796 = vmatpush1.msra.mxu0 0.0
        %797 = vmatprep.subr.mxu0 0.0
        %798 = vmatpush1.msra.mxu0 0.0
        %799 = vmatprep.subr.mxu0 0.0
        %800 = vmatpush1.msra.mxu0 0.0
        %801 = vmatprep.subr.mxu0 0.0
        %802 = vmatpush1.msra.mxu0 0.0
        %803 = vmatprep.subr.mxu0 0.0
        %804 = vmatpush1.msra.mxu0 0.0
        %805 = vmatprep.subr.mxu0 0.0
        %806 = vmatpush1.msra.mxu0 0.0
        %807 = vmatprep.subr.mxu0 0.0
        %808 = vmatpush1.msra.mxu0 0.0
        %809 = vmatprep.subr.mxu0 0.0
        %810 = vmatpush1.msra.mxu0 0.0
        %811 = vmatprep.subr.mxu0 0.0
        %812 = vmatpush1.msra.mxu0 0.0
        %813 = vmatprep.subr.mxu0 0.0
        %814 = vmatpush1.msra.mxu0 0.0
        %815 = vmatprep.subr.mxu0 0.0
        %816 = vmatpush1.msra.mxu0 0.0
        %817 = vmatprep.subr.mxu0 0.0
        %818 = vmatpush1.msra.mxu0 0.0
        %819 = vmatprep.subr.mxu0 0.0
        %820 = vmatpush1.msra.mxu0 0.0
        %821 = vmatprep.subr.mxu0 0.0
        %822 = vmatpush1.msra.mxu0 0.0
        %823 = vmatprep.subr.mxu0 0.0
        %824 = vmatpush1.msra.mxu0 0.0
        %825 = vmatprep.subr.mxu0 0.0
        %826 = vmatpush1.msra.mxu0 0.0
        %827 = vmatprep.subr.mxu0 0.0
        %828 = vmatpush1.msra.mxu0 0.0
        %829 = vmatprep.subr.mxu0 0.0
        %830 = vmatpush1.msra.mxu0 0.0
        %831 = vmatprep.subr.mxu0 0.0
        %832 = vmatpush1.msra.mxu0 0.0
        %833 = vmatprep.subr.mxu0 0.0
        %834 = vmatpush1.msra.mxu0 0.0
        %835 = vmatprep.subr.mxu0 0.0
        %836 = vmatpush1.msra.mxu0 0.0
        %837 = vmatprep.subr.mxu0 0.0
        %838 = vmatpush1.msra.mxu0 0.0
        %839 = vmatprep.subr.mxu0 0.0
        %840 = vmatpush1.msra.mxu0 0.0
        %841 = vmatprep.subr.mxu0 0.0
        %842 = vmatpush1.msra.mxu0 0.0
        %843 = vmatprep.subr.mxu0 0.0
        %844 = vmatpush1.msra.mxu0 0.0
        %845 = vmatprep.subr.mxu0 0.0
        %846 = vmatpush1.msra.mxu0 0.0
        %847 = vmatprep.subr.mxu0 0.0
        %848 = vmatpush1.msra.mxu0 0.0
        %849 = vmatprep.subr.mxu0 0.0
        %850 = vmatpush1.msra.mxu0 0.0
        %851 = vmatprep.subr.mxu0 0.0
        %852 = vmatpush1.msra.mxu0 0.0
        %853 = vmatprep.mubr.f32.mxu0 0.0
        %854 = vmatmul.mubr.f32.gmra.mrb[0].mxu0 %v787
        %v855 = vpop.f32.mrb[0].mxu0
        %v856 = vadd.f32 0.0, %v855
        %v857 = vpop.f32.mrb[0].mxu0
        %858 = vdwg.mxu0
        %v859 = vadd.f32 %v782, %v856
        %860 = vst.msk [vmem:[#allocation5] sm:$0xff] %vm673, %v859
        %861 = vst.msk [vmem:[#allocation3] sm:$0xff] %vm774, %v756
        %v862 = vld [vmem:[#allocation2] sm:$0xff]
        %864 = vrot.lane.b32.xlu0 %v862, 120
        %v865 = vpop.permute.xlu0 %864
        %866 = vrot.lane.b32.xlu0 %v667, 120
        %v867 = vpop.permute.xlu0 %866
        %v868 = vsel %vm673, %v865, 0
        %v870 = vsel %vm673, %v867, 0
        %872 = vmatprep.subr.mxu0 0.0
        %873 = vmatpush1.xpose.msra.mxu0 %v870
        %874 = vmatprep.subr.mxu0 0.0
        %875 = vmatpush1.xpose.msra.mxu0 0.0
        %876 = vmatprep.subr.mxu0 0.0
        %877 = vmatpush1.xpose.msra.mxu0 0.0
        %878 = vmatprep.subr.mxu0 0.0
        %879 = vmatpush1.xpose.msra.mxu0 0.0
        %880 = vmatprep.subr.mxu0 0.0
        %881 = vmatpush1.xpose.msra.mxu0 0.0
        %882 = vmatprep.subr.mxu0 0.0
        %883 = vmatpush1.xpose.msra.mxu0 0.0
        %884 = vmatprep.subr.mxu0 0.0
        %885 = vmatpush1.xpose.msra.mxu0 0.0
        %886 = vmatprep.subr.mxu0 0.0
        %887 = vmatpush1.xpose.msra.mxu0 0.0
        %888 = vmatprep.subr.mxu0 0.0
        %889 = vmatpush1.xpose.msra.mxu0 0.0
        %890 = vmatprep.subr.mxu0 0.0
        %891 = vmatpush1.xpose.msra.mxu0 0.0
        %892 = vmatprep.subr.mxu0 0.0
        %893 = vmatpush1.xpose.msra.mxu0 0.0
        %894 = vmatprep.subr.mxu0 0.0
        %895 = vmatpush1.xpose.msra.mxu0 0.0
        %896 = vmatprep.subr.mxu0 0.0
        %897 = vmatpush1.xpose.msra.mxu0 0.0
        %898 = vmatprep.subr.mxu0 0.0
        %899 = vmatpush1.xpose.msra.mxu0 0.0
        %900 = vmatprep.subr.mxu0 0.0
        %901 = vmatpush1.xpose.msra.mxu0 0.0
        %902 = vmatprep.subr.mxu0 0.0
        %903 = vmatpush1.xpose.msra.mxu0 0.0
        %904 = vmatprep.subr.mxu0 0.0
        %905 = vmatpush1.xpose.msra.mxu0 0.0
        %906 = vmatprep.subr.mxu0 0.0
        %907 = vmatpush1.xpose.msra.mxu0 0.0
        %908 = vmatprep.subr.mxu0 0.0
        %909 = vmatpush1.xpose.msra.mxu0 0.0
        %910 = vmatprep.subr.mxu0 0.0
        %911 = vmatpush1.xpose.msra.mxu0 0.0
        %912 = vmatprep.subr.mxu0 0.0
        %913 = vmatpush1.xpose.msra.mxu0 0.0
        %914 = vmatprep.subr.mxu0 0.0
        %915 = vmatpush1.xpose.msra.mxu0 0.0
        %916 = vmatprep.subr.mxu0 0.0
        %917 = vmatpush1.xpose.msra.mxu0 0.0
        %918 = vmatprep.subr.mxu0 0.0
        %919 = vmatpush1.xpose.msra.mxu0 0.0
        %920 = vmatprep.subr.mxu0 0.0
        %921 = vmatpush1.xpose.msra.mxu0 0.0
        %922 = vmatprep.subr.mxu0 0.0
        %923 = vmatpush1.xpose.msra.mxu0 0.0
        %924 = vmatprep.subr.mxu0 0.0
        %925 = vmatpush1.xpose.msra.mxu0 0.0
        %926 = vmatprep.subr.mxu0 0.0
        %927 = vmatpush1.xpose.msra.mxu0 0.0
        %928 = vmatprep.subr.mxu0 0.0
        %929 = vmatpush1.xpose.msra.mxu0 0.0
        %930 = vmatprep.subr.mxu0 0.0
        %931 = vmatpush1.xpose.msra.mxu0 0.0
        %932 = vmatprep.subr.mxu0 0.0
        %933 = vmatpush1.xpose.msra.mxu0 0.0
        %934 = vmatprep.subr.mxu0 0.0
        %935 = vmatpush1.xpose.msra.mxu0 0.0
        %936 = vmatprep.mubr.f32.mxu0 0.0
        %937 = vmatmul.mubr.f32.gmra.mrb[0].mxu0 %v868
        %v938 = vpop.f32.mrb[0].mxu0
        %v939 = vadd.f32 0.0, %v938
        %v940 = vpop.f32.mrb[0].mxu0
        %941 = vdwg.mxu0
        %v942 = vmul.f32 %v939, 0.35355338
        %v943 = vsel %vm671, 1e+09, %v942
        %s944 = scalar_lea.vmem [#allocation3], 8
        %v945 = vld [vmem:[%s944] sm:$0xff]
        %v946 = vsel %vm673, %v943, -inf
        %947 = vmax.xlane.f32.xlu0 %v946
        %v948 = vpop.xlane.xlu0 %947
        %v949 = vmax.f32 %v945, %v948
        %v950 = vsub.f32 %v945, %v949
        %v951 = vmul.f32 %v950, 1.442695
        %v952 = vpow.pop %v951
        %954 = vset.pattern.permute.xlu0 0
        %955 = vperm.xlu0 %954, %v949
        %v956 = vpop.permute.xlu0 %955
        %v958 = vsub.f32 %v943, %v956
        %v959 = vmul.f32 %v958, 1.442695
        %v960 = vpow.pop %v959
        %s961 = scalar_lea.vmem [#allocation4], 8
        %v962 = vld [vmem:[%s961] sm:$0xff]
        %v963 = vmul.f32 %v952, %v962
        %v964 = vsel %vm673, %v960, 0.0
        %965 = vadd.xlane.f32.xlu0 %v964
        %v966 = vpop.xlane.xlu0 %965
        %v967 = vadd.f32 %v963, %v966
        %968 = vst.msk [vmem:[%s961] sm:$0xff] %vm774, %v967
        %v969 = vld [vmem:[#allocation5] sm:$0xff]
        %971 = vset.pattern.permute.xlu0 0
        %972 = vperm.xlu0 %971, %v952
        %v973 = vpop.permute.xlu0 %972
        %v975 = vmul.f32 %v973, %v969
        %976 = vrot.lane.b32.xlu0 %v667, 88
        %v977 = vpop.permute.xlu0 %976
        %v980 = vsel %vm673, %v960, 0
        %982 = vmatprep.subr.mxu0 0.0
        %983 = vmatpush1.msra.mxu0 %v977
        %984 = vmatprep.subr.mxu0 0.0
        %985 = vmatpush1.msra.mxu0 0.0
        %986 = vmatprep.subr.mxu0 0.0
        %987 = vmatpush1.msra.mxu0 0.0
        %988 = vmatprep.subr.mxu0 0.0
        %989 = vmatpush1.msra.mxu0 0.0
        %990 = vmatprep.subr.mxu0 0.0
        %991 = vmatpush1.msra.mxu0 0.0
        %992 = vmatprep.subr.mxu0 0.0
        %993 = vmatpush1.msra.mxu0 0.0
        %994 = vmatprep.subr.mxu0 0.0
        %995 = vmatpush1.msra.mxu0 0.0
        %996 = vmatprep.subr.mxu0 0.0
        %997 = vmatpush1.msra.mxu0 0.0
        %998 = vmatprep.subr.mxu0 0.0
        %999 = vmatpush1.msra.mxu0 0.0
        %1000 = vmatprep.subr.mxu0 0.0
        %1001 = vmatpush1.msra.mxu0 0.0
        %1002 = vmatprep.subr.mxu0 0.0
        %1003 = vmatpush1.msra.mxu0 0.0
        %1004 = vmatprep.subr.mxu0 0.0
        %1005 = vmatpush1.msra.mxu0 0.0
        %1006 = vmatprep.subr.mxu0 0.0
        %1007 = vmatpush1.msra.mxu0 0.0
        %1008 = vmatprep.subr.mxu0 0.0
        %1009 = vmatpush1.msra.mxu0 0.0
        %1010 = vmatprep.subr.mxu0 0.0
        %1011 = vmatpush1.msra.mxu0 0.0
        %1012 = vmatprep.subr.mxu0 0.0
        %1013 = vmatpush1.msra.mxu0 0.0
        %1014 = vmatprep.subr.mxu0 0.0
        %1015 = vmatpush1.msra.mxu0 0.0
        %1016 = vmatprep.subr.mxu0 0.0
        %1017 = vmatpush1.msra.mxu0 0.0
        %1018 = vmatprep.subr.mxu0 0.0
        %1019 = vmatpush1.msra.mxu0 0.0
        %1020 = vmatprep.subr.mxu0 0.0
        %1021 = vmatpush1.msra.mxu0 0.0
        %1022 = vmatprep.subr.mxu0 0.0
        %1023 = vmatpush1.msra.mxu0 0.0
        %1024 = vmatprep.subr.mxu0 0.0
        %1025 = vmatpush1.msra.mxu0 0.0
        %1026 = vmatprep.subr.mxu0 0.0
        %1027 = vmatpush1.msra.mxu0 0.0
        %1028 = vmatprep.subr.mxu0 0.0
        %1029 = vmatpush1.msra.mxu0 0.0
        %1030 = vmatprep.subr.mxu0 0.0
        %1031 = vmatpush1.msra.mxu0 0.0
        %1032 = vmatprep.subr.mxu0 0.0
        %1033 = vmatpush1.msra.mxu0 0.0
        %1034 = vmatprep.subr.mxu0 0.0
        %1035 = vmatpush1.msra.mxu0 0.0
        %1036 = vmatprep.subr.mxu0 0.0
        %1037 = vmatpush1.msra.mxu0 0.0
        %1038 = vmatprep.subr.mxu0 0.0
        %1039 = vmatpush1.msra.mxu0 0.0
        %1040 = vmatprep.subr.mxu0 0.0
        %1041 = vmatpush1.msra.mxu0 0.0
        %1042 = vmatprep.subr.mxu0 0.0
        %1043 = vmatpush1.msra.mxu0 0.0
        %1044 = vmatprep.subr.mxu0 0.0
        %1045 = vmatpush1.msra.mxu0 0.0
        %1046 = vmatprep.mubr.f32.mxu0 0.0
        %1047 = vmatmul.mubr.f32.gmra.mrb[0].mxu0 %v980
        %v1048 = vpop.f32.mrb[0].mxu0
        %v1049 = vadd.f32 0.0, %v1048
        %v1050 = vpop.f32.mrb[0].mxu0
        %1051 = vdwg.mxu0
        %1053 = vrot.lane.b32.xlu0 %v1049, 8
        %v1054 = vpop.permute.xlu0 %1053
        %v1056 = vadd.f32 %v975, %v1054
        %vm1057 = vcmask 130112
        %1058 = vst.msk [vmem:[#allocation5] sm:$0xff] %vm1057, %v1056
        %1059 = vst.msk [vmem:[%s944] sm:$0xff] %vm774, %v949
        %v1060 = vld [vmem:[#allocation2] sm:$0xff]
        %1062 = vrot.lane.b32.xlu0 %v1060, 112
        %v1063 = vpop.permute.xlu0 %1062
        %1064 = vrot.lane.b32.xlu0 %v667, 112
        %v1065 = vpop.permute.xlu0 %1064
        %v1066 = vsel %vm673, %v1063, 0
        %v1068 = vsel %vm673, %v1065, 0
        %1070 = vmatprep.subr.mxu0 0.0
        %1071 = vmatpush1.xpose.msra.mxu0 %v1068
        %1072 = vmatprep.subr.mxu0 0.0
        %1073 = vmatpush1.xpose.msra.mxu0 0.0
        %1074 = vmatprep.subr.mxu0 0.0
        %1075 = vmatpush1.xpose.msra.mxu0 0.0
        %1076 = vmatprep.subr.mxu0 0.0
        %1077 = vmatpush1.xpose.msra.mxu0 0.0
        %1078 = vmatprep.subr.mxu0 0.0
        %1079 = vmatpush1.xpose.msra.mxu0 0.0
        %1080 = vmatprep.subr.mxu0 0.0
        %1081 = vmatpush1.xpose.msra.mxu0 0.0
        %1082 = vmatprep.subr.mxu0 0.0
        %1083 = vmatpush1.xpose.msra.mxu0 0.0
        %1084 = vmatprep.subr.mxu0 0.0
        %1085 = vmatpush1.xpose.msra.mxu0 0.0
        %1086 = vmatprep.subr.mxu0 0.0
        %1087 = vmatpush1.xpose.msra.mxu0 0.0
        %1088 = vmatprep.subr.mxu0 0.0
        %1089 = vmatpush1.xpose.msra.mxu0 0.0
        %1090 = vmatprep.subr.mxu0 0.0
        %1091 = vmatpush1.xpose.msra.mxu0 0.0
        %1092 = vmatprep.subr.mxu0 0.0
        %1093 = vmatpush1.xpose.msra.mxu0 0.0
        %1094 = vmatprep.subr.mxu0 0.0
        %1095 = vmatpush1.xpose.msra.mxu0 0.0
        %1096 = vmatprep.subr.mxu0 0.0
        %1097 = vmatpush1.xpose.msra.mxu0 0.0
        %1098 = vmatprep.subr.mxu0 0.0
        %1099 = vmatpush1.xpose.msra.mxu0 0.0
        %1100 = vmatprep.subr.mxu0 0.0
        %1101 = vmatpush1.xpose.msra.mxu0 0.0
        %1102 = vmatprep.subr.mxu0 0.0
        %1103 = vmatpush1.xpose.msra.mxu0 0.0
        %1104 = vmatprep.subr.mxu0 0.0
        %1105 = vmatpush1.xpose.msra.mxu0 0.0
        %1106 = vmatprep.subr.mxu0 0.0
        %1107 = vmatpush1.xpose.msra.mxu0 0.0
        %1108 = vmatprep.subr.mxu0 0.0
        %1109 = vmatpush1.xpose.msra.mxu0 0.0
        %1110 = vmatprep.subr.mxu0 0.0
        %1111 = vmatpush1.xpose.msra.mxu0 0.0
        %1112 = vmatprep.subr.mxu0 0.0
        %1113 = vmatpush1.xpose.msra.mxu0 0.0
        %1114 = vmatprep.subr.mxu0 0.0
        %1115 = vmatpush1.xpose.msra.mxu0 0.0
        %1116 = vmatprep.subr.mxu0 0.0
        %1117 = vmatpush1.xpose.msra.mxu0 0.0
        %1118 = vmatprep.subr.mxu0 0.0
        %1119 = vmatpush1.xpose.msra.mxu0 0.0
        %1120 = vmatprep.subr.mxu0 0.0
        %1121 = vmatpush1.xpose.msra.mxu0 0.0
        %1122 = vmatprep.subr.mxu0 0.0
        %1123 = vmatpush1.xpose.msra.mxu0 0.0
        %1124 = vmatprep.subr.mxu0 0.0
        %1125 = vmatpush1.xpose.msra.mxu0 0.0
        %1126 = vmatprep.subr.mxu0 0.0
        %1127 = vmatpush1.xpose.msra.mxu0 0.0
        %1128 = vmatprep.subr.mxu0 0.0
        %1129 = vmatpush1.xpose.msra.mxu0 0.0
        %1130 = vmatprep.subr.mxu0 0.0
        %1131 = vmatpush1.xpose.msra.mxu0 0.0
        %1132 = vmatprep.subr.mxu0 0.0
        %1133 = vmatpush1.xpose.msra.mxu0 0.0
        %1134 = vmatprep.mubr.f32.mxu0 0.0
        %1135 = vmatmul.mubr.f32.gmra.mrb[0].mxu0 %v1066
        %v1136 = vpop.f32.mrb[0].mxu0
        %v1137 = vadd.f32 0.0, %v1136
        %v1138 = vpop.f32.mrb[0].mxu0
        %1139 = vdwg.mxu0
        %v1140 = vmul.f32 %v1137, 0.35355338
        %v1141 = vsel %vm671, 1e+09, %v1140
        %s1142 = scalar_lea.vmem [#allocation3], 16
        %v1143 = vld [vmem:[%s1142] sm:$0xff]
        %v1144 = vsel %vm673, %v1141, -inf
        %1145 = vmax.xlane.f32.xlu0 %v1144
        %v1146 = vpop.xlane.xlu0 %1145
        %v1147 = vmax.f32 %v1143, %v1146
        %v1148 = vsub.f32 %v1143, %v1147
        %v1149 = vmul.f32 %v1148, 1.442695
        %v1150 = vpow.pop %v1149
        %1152 = vset.pattern.permute.xlu0 0
        %1153 = vperm.xlu0 %1152, %v1147
        %v1154 = vpop.permute.xlu0 %1153
        %v1156 = vsub.f32 %v1141, %v1154
        %v1157 = vmul.f32 %v1156, 1.442695
        %v1158 = vpow.pop %v1157
        %s1159 = scalar_lea.vmem [#allocation4], 16
        %v1160 = vld [vmem:[%s1159] sm:$0xff]
        %v1161 = vmul.f32 %v1150, %v1160
        %v1162 = vsel %vm673, %v1158, 0.0
        %1163 = vadd.xlane.f32.xlu0 %v1162
        %v1164 = vpop.xlane.xlu0 %1163
        %v1165 = vadd.f32 %v1161, %v1164
        %1166 = vst.msk [vmem:[%s1159] sm:$0xff] %vm774, %v1165
        %v1167 = vld [vmem:[#allocation5] sm:$0xff]
        %1169 = vset.pattern.permute.xlu0 0
        %1170 = vperm.xlu0 %1169, %v1150
        %v1171 = vpop.permute.xlu0 %1170
        %v1173 = vmul.f32 %v1171, %v1167
        %1174 = vrot.lane.b32.xlu0 %v667, 80
        %v1175 = vpop.permute.xlu0 %1174
        %v1178 = vsel %vm673, %v1158, 0
        %1180 = vmatprep.subr.mxu0 0.0
        %1181 = vmatpush1.msra.mxu0 %v1175
        %1182 = vmatprep.subr.mxu0 0.0
        %1183 = vmatpush1.msra.mxu0 0.0
        %1184 = vmatprep.subr.mxu0 0.0
        %1185 = vmatpush1.msra.mxu0 0.0
        %1186 = vmatprep.subr.mxu0 0.0
        %1187 = vmatpush1.msra.mxu0 0.0
        %1188 = vmatprep.subr.mxu0 0.0
        %1189 = vmatpush1.msra.mxu0 0.0
        %1190 = vmatprep.subr.mxu0 0.0
        %1191 = vmatpush1.msra.mxu0 0.0
        %1192 = vmatprep.subr.mxu0 0.0
        %1193 = vmatpush1.msra.mxu0 0.0
        %1194 = vmatprep.subr.mxu0 0.0
        %1195 = vmatpush1.msra.mxu0 0.0
        %1196 = vmatprep.subr.mxu0 0.0
        %1197 = vmatpush1.msra.mxu0 0.0
        %1198 = vmatprep.subr.mxu0 0.0
        %1199 = vmatpush1.msra.mxu0 0.0
        %1200 = vmatprep.subr.mxu0 0.0
        %1201 = vmatpush1.msra.mxu0 0.0
        %1202 = vmatprep.subr.mxu0 0.0
        %1203 = vmatpush1.msra.mxu0 0.0
        %1204 = vmatprep.subr.mxu0 0.0
        %1205 = vmatpush1.msra.mxu0 0.0
        %1206 = vmatprep.subr.mxu0 0.0
        %1207 = vmatpush1.msra.mxu0 0.0
        %1208 = vmatprep.subr.mxu0 0.0
        %1209 = vmatpush1.msra.mxu0 0.0
        %1210 = vmatprep.subr.mxu0 0.0
        %1211 = vmatpush1.msra.mxu0 0.0
        %1212 = vmatprep.subr.mxu0 0.0
        %1213 = vmatpush1.msra.mxu0 0.0
        %1214 = vmatprep.subr.mxu0 0.0
        %1215 = vmatpush1.msra.mxu0 0.0
        %1216 = vmatprep.subr.mxu0 0.0
        %1217 = vmatpush1.msra.mxu0 0.0
        %1218 = vmatprep.subr.mxu0 0.0
        %1219 = vmatpush1.msra.mxu0 0.0
        %1220 = vmatprep.subr.mxu0 0.0
        %1221 = vmatpush1.msra.mxu0 0.0
        %1222 = vmatprep.subr.mxu0 0.0
        %1223 = vmatpush1.msra.mxu0 0.0
        %1224 = vmatprep.subr.mxu0 0.0
        %1225 = vmatpush1.msra.mxu0 0.0
        %1226 = vmatprep.subr.mxu0 0.0
        %1227 = vmatpush1.msra.mxu0 0.0
        %1228 = vmatprep.subr.mxu0 0.0
        %1229 = vmatpush1.msra.mxu0 0.0
        %1230 = vmatprep.subr.mxu0 0.0
        %1231 = vmatpush1.msra.mxu0 0.0
        %1232 = vmatprep.subr.mxu0 0.0
        %1233 = vmatpush1.msra.mxu0 0.0
        %1234 = vmatprep.subr.mxu0 0.0
        %1235 = vmatpush1.msra.mxu0 0.0
        %1236 = vmatprep.subr.mxu0 0.0
        %1237 = vmatpush1.msra.mxu0 0.0
        %1238 = vmatprep.subr.mxu0 0.0
        %1239 = vmatpush1.msra.mxu0 0.0
        %1240 = vmatprep.subr.mxu0 0.0
        %1241 = vmatpush1.msra.mxu0 0.0
        %1242 = vmatprep.subr.mxu0 0.0
        %1243 = vmatpush1.msra.mxu0 0.0
        %1244 = vmatprep.mubr.f32.mxu0 0.0
        %1245 = vmatmul.mubr.f32.gmra.mrb[0].mxu0 %v1178
        %v1246 = vpop.f32.mrb[0].mxu0
        %v1247 = vadd.f32 0.0, %v1246
        %v1248 = vpop.f32.mrb[0].mxu0
        %1249 = vdwg.mxu0
        %1251 = vrot.lane.b32.xlu0 %v1247, 16
        %v1252 = vpop.permute.xlu0 %1251
        %v1254 = vadd.f32 %v1173, %v1252
        %vm1255 = vcmask 195712
        %1256 = vst.msk [vmem:[#allocation5] sm:$0xff] %vm1255, %v1254
        %1257 = vst.msk [vmem:[%s1142] sm:$0xff] %vm774, %v1147
        %v1258 = vld [vmem:[#allocation2] sm:$0xff]
        %1260 = vrot.lane.b32.xlu0 %v1258, 104
        %v1261 = vpop.permute.xlu0 %1260
        %1262 = vrot.lane.b32.xlu0 %v667, 104
        %v1263 = vpop.permute.xlu0 %1262
        %v1264 = vsel %vm673, %v1261, 0
        %v1266 = vsel %vm673, %v1263, 0
        %1268 = vmatprep.subr.mxu0 0.0
        %1269 = vmatpush1.xpose.msra.mxu0 %v1266
        %1270 = vmatprep.subr.mxu0 0.0
        %1271 = vmatpush1.xpose.msra.mxu0 0.0
        %1272 = vmatprep.subr.mxu0 0.0
        %1273 = vmatpush1.xpose.msra.mxu0 0.0
        %1274 = vmatprep.subr.mxu0 0.0
        %1275 = vmatpush1.xpose.msra.mxu0 0.0
        %1276 = vmatprep.subr.mxu0 0.0
        %1277 = vmatpush1.xpose.msra.mxu0 0.0
        %1278 = vmatprep.subr.mxu0 0.0
        %1279 = vmatpush1.xpose.msra.mxu0 0.0
        %1280 = vmatprep.subr.mxu0 0.0
        %1281 = vmatpush1.xpose.msra.mxu0 0.0
        %1282 = vmatprep.subr.mxu0 0.0
        %1283 = vmatpush1.xpose.msra.mxu0 0.0
        %1284 = vmatprep.subr.mxu0 0.0
        %1285 = vmatpush1.xpose.msra.mxu0 0.0
        %1286 = vmatprep.subr.mxu0 0.0
        %1287 = vmatpush1.xpose.msra.mxu0 0.0
        %1288 = vmatprep.subr.mxu0 0.0
        %1289 = vmatpush1.xpose.msra.mxu0 0.0
        %1290 = vmatprep.subr.mxu0 0.0
        %1291 = vmatpush1.xpose.msra.mxu0 0.0
        %1292 = vmatprep.subr.mxu0 0.0
        %1293 = vmatpush1.xpose.msra.mxu0 0.0
        %1294 = vmatprep.subr.mxu0 0.0
        %1295 = vmatpush1.xpose.msra.mxu0 0.0
        %1296 = vmatprep.subr.mxu0 0.0
        %1297 = vmatpush1.xpose.msra.mxu0 0.0
        %1298 = vmatprep.subr.mxu0 0.0
        %1299 = vmatpush1.xpose.msra.mxu0 0.0
        %1300 = vmatprep.subr.mxu0 0.0
        %1301 = vmatpush1.xpose.msra.mxu0 0.0
        %1302 = vmatprep.subr.mxu0 0.0
        %1303 = vmatpush1.xpose.msra.mxu0 0.0
        %1304 = vmatprep.subr.mxu0 0.0
        %1305 = vmatpush1.xpose.msra.mxu0 0.0
        %1306 = vmatprep.subr.mxu0 0.0
        %1307 = vmatpush1.xpose.msra.mxu0 0.0
        %1308 = vmatprep.subr.mxu0 0.0
        %1309 = vmatpush1.xpose.msra.mxu0 0.0
        %1310 = vmatprep.subr.mxu0 0.0
        %1311 = vmatpush1.xpose.msra.mxu0 0.0
        %1312 = vmatprep.subr.mxu0 0.0
        %1313 = vmatpush1.xpose.msra.mxu0 0.0
        %1314 = vmatprep.subr.mxu0 0.0
        %1315 = vmatpush1.xpose.msra.mxu0 0.0
        %1316 = vmatprep.subr.mxu0 0.0
        %1317 = vmatpush1.xpose.msra.mxu0 0.0
        %1318 = vmatprep.subr.mxu0 0.0
        %1319 = vmatpush1.xpose.msra.mxu0 0.0
        %1320 = vmatprep.subr.mxu0 0.0
        %1321 = vmatpush1.xpose.msra.mxu0 0.0
        %1322 = vmatprep.subr.mxu0 0.0
        %1323 = vmatpush1.xpose.msra.mxu0 0.0
        %1324 = vmatprep.subr.mxu0 0.0
        %1325 = vmatpush1.xpose.msra.mxu0 0.0
        %1326 = vmatprep.subr.mxu0 0.0
        %1327 = vmatpush1.xpose.msra.mxu0 0.0
        %1328 = vmatprep.subr.mxu0 0.0
        %1329 = vmatpush1.xpose.msra.mxu0 0.0
        %1330 = vmatprep.subr.mxu0 0.0
        %1331 = vmatpush1.xpose.msra.mxu0 0.0
        %1332 = vmatprep.mubr.f32.mxu0 0.0
        %1333 = vmatmul.mubr.f32.gmra.mrb[0].mxu0 %v1264
        %v1334 = vpop.f32.mrb[0].mxu0
        %v1335 = vadd.f32 0.0, %v1334
        %v1336 = vpop.f32.mrb[0].mxu0
        %1337 = vdwg.mxu0
        %v1338 = vmul.f32 %v1335, 0.35355338
        %v1339 = vsel %vm671, 1e+09, %v1338
        %s1340 = scalar_lea.vmem [#allocation3], 24
        %v1341 = vld [vmem:[%s1340] sm:$0xff]
        %v1342 = vsel %vm673, %v1339, -inf
        %1343 = vmax.xlane.f32.xlu0 %v1342
        %v1344 = vpop.xlane.xlu0 %1343
        %v1345 = vmax.f32 %v1341, %v1344
        %v1346 = vsub.f32 %v1341, %v1345
        %v1347 = vmul.f32 %v1346, 1.442695
        %v1348 = vpow.pop %v1347
        %1350 = vset.pattern.permute.xlu0 0
        %1351 = vperm.xlu0 %1350, %v1345
        %v1352 = vpop.permute.xlu0 %1351
        %v1354 = vsub.f32 %v1339, %v1352
        %v1355 = vmul.f32 %v1354, 1.442695
        %v1356 = vpow.pop %v1355
        %s1357 = scalar_lea.vmem [#allocation4], 24
        %v1358 = vld [vmem:[%s1357] sm:$0xff]
        %v1359 = vmul.f32 %v1348, %v1358
        %v1360 = vsel %vm673, %v1356, 0.0
        %1361 = vadd.xlane.f32.xlu0 %v1360
        %v1362 = vpop.xlane.xlu0 %1361
        %v1363 = vadd.f32 %v1359, %v1362
        %1364 = vst.msk [vmem:[%s1357] sm:$0xff] %vm774, %v1363
        %v1365 = vld [vmem:[#allocation5] sm:$0xff]
        %1367 = vset.pattern.permute.xlu0 0
        %1368 = vperm.xlu0 %1367, %v1348
        %v1369 = vpop.permute.xlu0 %1368
        %v1371 = vmul.f32 %v1369, %v1365
        %1372 = vrot.lane.b32.xlu0 %v667, 72
        %v1373 = vpop.permute.xlu0 %1372
        %v1376 = vsel %vm673, %v1356, 0
        %1378 = vmatprep.subr.mxu0 0.0
        %1379 = vmatpush1.msra.mxu0 %v1373
        %1380 = vmatprep.subr.mxu0 0.0
        %1381 = vmatpush1.msra.mxu0 0.0
        %1382 = vmatprep.subr.mxu0 0.0
        %1383 = vmatpush1.msra.mxu0 0.0
        %1384 = vmatprep.subr.mxu0 0.0
        %1385 = vmatpush1.msra.mxu0 0.0
        %1386 = vmatprep.subr.mxu0 0.0
        %1387 = vmatpush1.msra.mxu0 0.0
        %1388 = vmatprep.subr.mxu0 0.0
        %1389 = vmatpush1.msra.mxu0 0.0
        %1390 = vmatprep.subr.mxu0 0.0
        %1391 = vmatpush1.msra.mxu0 0.0
        %1392 = vmatprep.subr.mxu0 0.0
        %1393 = vmatpush1.msra.mxu0 0.0
        %1394 = vmatprep.subr.mxu0 0.0
        %1395 = vmatpush1.msra.mxu0 0.0
        %1396 = vmatprep.subr.mxu0 0.0
        %1397 = vmatpush1.msra.mxu0 0.0
        %1398 = vmatprep.subr.mxu0 0.0
        %1399 = vmatpush1.msra.mxu0 0.0
        %1400 = vmatprep.subr.mxu0 0.0
        %1401 = vmatpush1.msra.mxu0 0.0
        %1402 = vmatprep.subr.mxu0 0.0
        %1403 = vmatpush1.msra.mxu0 0.0
        %1404 = vmatprep.subr.mxu0 0.0
        %1405 = vmatpush1.msra.mxu0 0.0
        %1406 = vmatprep.subr.mxu0 0.0
        %1407 = vmatpush1.msra.mxu0 0.0
        %1408 = vmatprep.subr.mxu0 0.0
        %1409 = vmatpush1.msra.mxu0 0.0
        %1410 = vmatprep.subr.mxu0 0.0
        %1411 = vmatpush1.msra.mxu0 0.0
        %1412 = vmatprep.subr.mxu0 0.0
        %1413 = vmatpush1.msra.mxu0 0.0
        %1414 = vmatprep.subr.mxu0 0.0
        %1415 = vmatpush1.msra.mxu0 0.0
        %1416 = vmatprep.subr.mxu0 0.0
        %1417 = vmatpush1.msra.mxu0 0.0
        %1418 = vmatprep.subr.mxu0 0.0
        %1419 = vmatpush1.msra.mxu0 0.0
        %1420 = vmatprep.subr.mxu0 0.0
        %1421 = vmatpush1.msra.mxu0 0.0
        %1422 = vmatprep.subr.mxu0 0.0
        %1423 = vmatpush1.msra.mxu0 0.0
        %1424 = vmatprep.subr.mxu0 0.0
        %1425 = vmatpush1.msra.mxu0 0.0
        %1426 = vmatprep.subr.mxu0 0.0
        %1427 = vmatpush1.msra.mxu0 0.0
        %1428 = vmatprep.subr.mxu0 0.0
        %1429 = vmatpush1.msra.mxu0 0.0
        %1430 = vmatprep.subr.mxu0 0.0
        %1431 = vmatpush1.msra.mxu0 0.0
        %1432 = vmatprep.subr.mxu0 0.0
        %1433 = vmatpush1.msra.mxu0 0.0
        %1434 = vmatprep.subr.mxu0 0.0
        %1435 = vmatpush1.msra.mxu0 0.0
        %1436 = vmatprep.subr.mxu0 0.0
        %1437 = vmatpush1.msra.mxu0 0.0
        %1438 = vmatprep.subr.mxu0 0.0
        %1439 = vmatpush1.msra.mxu0 0.0
        %1440 = vmatprep.subr.mxu0 0.0
        %1441 = vmatpush1.msra.mxu0 0.0
        %1442 = vmatprep.mubr.f32.mxu0 0.0
        %1443 = vmatmul.mubr.f32.gmra.mrb[0].mxu0 %v1376
        %v1444 = vpop.f32.mrb[0].mxu0
        %v1445 = vadd.f32 0.0, %v1444
        %v1446 = vpop.f32.mrb[0].mxu0
        %1447 = vdwg.mxu0
        %1449 = vrot.lane.b32.xlu0 %v1445, 24
        %v1450 = vpop.permute.xlu0 %1449
        %v1452 = vadd.f32 %v1371, %v1450
        %vm1453 = vcmask 261312
        %1454 = vst.msk [vmem:[#allocation5] sm:$0xff] %vm1453, %v1452
        %1455 = vst.msk [vmem:[%s1340] sm:$0xff] %vm774, %v1345
        // Predicated region
        $region81: #{tpu_custom_call.1} parent=55 // pred_check
          %p1456 = pneg %p483
        $region82: #{tpu_custom_call.1} parent=55 // pred_check_branch
          %1458 = sbr.rel (%p1456) target = $region84
        $region83: #{tpu_custom_call.1} parent=55 // pred_region
          %v1459 = vld [vmem:[#allocation4] sm:$0xff]
          %v1460 = vrcp.pop %v1459
          %v1461 = vld [vmem:[#allocation5] sm:$0xff]
          %1463 = vset.pattern.permute.xlu0 0
          %1464 = vperm.xlu0 %1463, %v1460
          %v1465 = vpop.permute.xlu0 %1464
          %v1467 = vmul.f32 %v1461, %v1465
          %1468 = vst.msk [vmem:[#allocation5] sm:$0xff] %vm673, %v1467
          %v1469 = vld [vmem:[%s961] sm:$0xff]
          %v1470 = vrcp.pop %v1469
          %v1471 = vld [vmem:[#allocation5] sm:$0xff]
          %1473 = vset.pattern.permute.xlu0 0
          %1474 = vperm.xlu0 %1473, %v1470
          %v1475 = vpop.permute.xlu0 %1474
          %v1477 = vmul.f32 %v1471, %v1475
          %1478 = vst.msk [vmem:[#allocation5] sm:$0xff] %vm1057, %v1477
          %v1479 = vld [vmem:[%s1159] sm:$0xff]
          %v1480 = vrcp.pop %v1479
          %v1481 = vld [vmem:[#allocation5] sm:$0xff]
          %1483 = vset.pattern.permute.xlu0 0
          %1484 = vperm.xlu0 %1483, %v1480
          %v1485 = vpop.permute.xlu0 %1484
          %v1487 = vmul.f32 %v1481, %v1485
          %1488 = vst.msk [vmem:[#allocation5] sm:$0xff] %vm1255, %v1487
          %v1489 = vld [vmem:[%s1357] sm:$0xff]
          %v1490 = vrcp.pop %v1489
          %v1491 = vld [vmem:[#allocation5] sm:$0xff]
          %1493 = vset.pattern.permute.xlu0 0
          %1494 = vperm.xlu0 %1493, %v1490
          %v1495 = vpop.permute.xlu0 %1494
          %v1497 = vmul.f32 %v1491, %v1495
          %1498 = vst.msk [vmem:[#allocation5] sm:$0xff] %vm1453, %v1497
          %v1499 = vld [vmem:[#allocation5] sm:$0xff]
          %v1500 = vld [vmem:[#allocation14] sm:$0xff]
          %v1501 = vld [vmem:[#allocation14 + $0x8] sm:$0xff]
          %v1502 = vld [vmem:[#allocation14 + $0x10] sm:$0xff]
          %v1503 = vld [vmem:[#allocation14 + $0x18] sm:$0xff]
          %v1504 = vld [vmem:[%s7] sm:$0x1]
          %v1506 = vlaneseq
          %v1507 = vshrl.u32 %v1506, 7
          %v1508 = vsub.s32 0, %v1507
          %v1509 = vrot.slane %v1504, %v1508
          %v1512 = vsel %vm596, %v1499, 0
          %1514 = vmatprep.subr.mxu0 0.0
          %1515 = vmatpush1.msra.mxu0 %v1500
          %1516 = vmatprep.subr.mxu0 0.0
          %1517 = vmatpush1.msra.mxu0 %v1501
          %1518 = vmatprep.subr.mxu0 0.0
          %1519 = vmatpush1.msra.mxu0 %v1502
          %1520 = vmatprep.subr.mxu0 0.0
          %1521 = vmatpush1.msra.mxu0 %v1503
          %1522 = vmatprep.subr.mxu0 0.0
          %1523 = vmatpush1.msra.mxu0 0.0
          %1524 = vmatprep.subr.mxu0 0.0
          %1525 = vmatpush1.msra.mxu0 0.0
          %1526 = vmatprep.subr.mxu0 0.0
          %1527 = vmatpush1.msra.mxu0 0.0
          %1528 = vmatprep.subr.mxu0 0.0
          %1529 = vmatpush1.msra.mxu0 0.0
          %1530 = vmatprep.subr.mxu0 0.0
          %1531 = vmatpush1.msra.mxu0 0.0
          %1532 = vmatprep.subr.mxu0 0.0
          %1533 = vmatpush1.msra.mxu0 0.0
          %1534 = vmatprep.subr.mxu0 0.0
          %1535 = vmatpush1.msra.mxu0 0.0
          %1536 = vmatprep.subr.mxu0 0.0
          %1537 = vmatpush1.msra.mxu0 0.0
          %1538 = vmatprep.subr.mxu0 0.0
          %1539 = vmatpush1.msra.mxu0 0.0
          %1540 = vmatprep.subr.mxu0 0.0
          %1541 = vmatpush1.msra.mxu0 0.0
          %1542 = vmatprep.subr.mxu0 0.0
          %1543 = vmatpush1.msra.mxu0 0.0
          %1544 = vmatprep.subr.mxu0 0.0
          %1545 = vmatpush1.msra.mxu0 0.0
          %1546 = vmatprep.subr.mxu0 0.0
          %1547 = vmatpush1.msra.mxu0 0.0
          %1548 = vmatprep.subr.mxu0 0.0
          %1549 = vmatpush1.msra.mxu0 0.0
          %1550 = vmatprep.subr.mxu0 0.0
          %1551 = vmatpush1.msra.mxu0 0.0
          %1552 = vmatprep.subr.mxu0 0.0
          %1553 = vmatpush1.msra.mxu0 0.0
          %1554 = vmatprep.subr.mxu0 0.0
          %1555 = vmatpush1.msra.mxu0 0.0
          %1556 = vmatprep.subr.mxu0 0.0
          %1557 = vmatpush1.msra.mxu0 0.0
          %1558 = vmatprep.subr.mxu0 0.0
          %1559 = vmatpush1.msra.mxu0 0.0
          %1560 = vmatprep.subr.mxu0 0.0
          %1561 = vmatpush1.msra.mxu0 0.0
          %1562 = vmatprep.subr.mxu0 0.0
          %1563 = vmatpush1.msra.mxu0 0.0
          %1564 = vmatprep.subr.mxu0 0.0
          %1565 = vmatpush1.msra.mxu0 0.0
          %1566 = vmatprep.subr.mxu0 0.0
          %1567 = vmatpush1.msra.mxu0 0.0
          %1568 = vmatprep.subr.mxu0 0.0
          %1569 = vmatpush1.msra.mxu0 0.0
          %1570 = vmatprep.subr.mxu0 0.0
          %1571 = vmatpush1.msra.mxu0 0.0
          %1572 = vmatprep.subr.mxu0 0.0
          %1573 = vmatpush1.msra.mxu0 0.0
          %1574 = vmatprep.subr.mxu0 0.0
          %1575 = vmatpush1.msra.mxu0 0.0
          %1576 = vmatprep.subr.mxu0 0.0
          %1577 = vmatpush1.msra.mxu0 0.0
          %1578 = vmatprep.mubr.f32.mxu0 0.0
          %1579 = vmatmul.mubr.f32.gmra.mrb[0].mxu0 %v1512
          %v1580 = vpop.f32.mrb[0].mxu0
          %v1581 = vadd.f32 %v1509, %v1580
          %v1582 = vpop.f32.mrb[0].mxu0
          %1583 = vdwg.mxu0
          %1584 = vst.msk [vmem:[%s475] sm:$0xff] %vm596, %v1581
        $region84: #{tpu_custom_call.1} parent=55 // pred_fallthru
          _
        %s1585 = sand.u32 %s269, 1
        %s1586 = scalar_lea.sflag [#allocation8], %s1585
        %s1587 = sand.u32 %s269, 1
        %s1588 = smul.addr %s1587, 8
        %s1589 = scalar_lea.vmem [#allocation15], %s1588
        // Predicated region
        $region85: #{tpu_custom_call.1} parent=55 // pred_check
          %p1590 = pneg %p279
        $region86: #{tpu_custom_call.1} parent=55 // pred_check_branch
          %1592 = sbr.rel (%p1590) target = $region88
        $region87: #{tpu_custom_call.1} parent=55 // pred_region
          %s1594 = ssub.s32 128, 128
          %1595 = vsyncadd %s1586, %s1594
          %s1596 = sadd.s32 %s36, %s35
          %s1597 = smul.addr %s1596, 128
          %s1598 = scalar_lea.hbm %s9, %s1597
          %s1600 = sshll.u32 %s1589, 4
          %s1601 = int_to_ptr.vmem [resolvable:$true] %s1600
          %1603 = dma.vmem_to_hbm [thread:$0]  %s1601, 128, %s1598, %s1586
        $region88: #{tpu_custom_call.1} parent=55 // pred_fallthru
          _
      $region56: #{tpu_custom_call.1} parent=5 // pred_fallthru
        _
      %p1604 = scmp.le.s32.totalorder 2, %s25
      // Predicated region
      $region89: #{tpu_custom_call.1} parent=5 // pred_check
        %p1605 = pneg %p1604
      $region90: #{tpu_custom_call.1} parent=5 // pred_check_branch
        %1607 = sbr.rel (%p1605) target = $region92
      $region91: #{tpu_custom_call.1} parent=5 // pred_region
        %s1608 = ssub.s32 %s25, 2
        // Predicated region
        $region93: #{tpu_custom_call.1} parent=91 // pred_check
          %p1609 = pneg %p285
        $region94: #{tpu_custom_call.1} parent=91 // pred_check_branch
          %1611 = sbr.rel (%p1609) target = $region96
        $region95: #{tpu_custom_call.1} parent=91 // pred_region
          %s1612 = sand.u32 %s270, 1
          %s1613 = scalar_lea.sflag [#allocation8], %s1612
          %s1614 = sand.u32 %s270, 1
          %s1615 = smul.addr %s1614, 8
          %s1616 = scalar_lea.vmem [#allocation15], %s1615
          %1617 = dma.done %s1613, 128
        $region96: #{tpu_custom_call.1} parent=91 // pred_fallthru
          _
      $region92: #{tpu_custom_call.1} parent=5 // pred_fallthru
        _
    $region6: #{tpu_custom_call.1} parent=1 // loop_footer
      %s29 = sadd.s32 1, %s25
    $region7: #{tpu_custom_call.1} parent=1 // loop_footer_branch
      %24 = sbr.rel target = $region3
    $region8: #{tpu_custom_call.1} parent=1 // loop_exit
      _
    %1618 = vsyncpa [#allocation7], 1
    %s1619 = scalar_lea.sflag [#allocation7], 1
    %1620 = vsyncpa %s1619, 1
    %1621 = vsyncpa [#allocation10], 1
    %s1622 = scalar_lea.sflag [#allocation10], 1
    %1623 = vsyncpa %s1622, 1
    %1624 = vsyncpa [#allocation13], 1
    %1625 = vsyncpa [#allocation8], 1
    %s1626 = scalar_lea.sflag [#allocation8], 1
    %1627 = vsyncpa %s1626, 1

</llo_original>
